<compile_context>
chip_gen: v5e
topology: v5e:2x2
jax: 0.10.0
libtpu: 0.0.40
codegen_flags: <defaults>
</compile_context>

<pallas_src>
import functools
import math

import jax
import jax.numpy as jnp
from jax.experimental import pallas as pl
from jax.experimental.pallas import tpu as pltpu


# ----------------------------------------------------------------------------
# VMEM budget, derived from the chip so the scoped limit is valid on v7x too.
# ----------------------------------------------------------------------------
def _vmem_limit_bytes():
    cap = 64 * 1024 * 1024                       # conservative fallback (v7x)
    try:
        cap = int(pltpu.get_tpu_info().vmem_capacity_bytes)
    except Exception:
        pass
    # leave headroom for Mosaic internal scratch / pipeline bookkeeping
    return min(int(cap * 3 // 4), 112 * 1024 * 1024)


_VMEM_LIMIT = _vmem_limit_bytes()
_TILE_BUDGET = _VMEM_LIMIT // 2


# ----------------------------------------------------------------------------
# Runtime probe: is pipeline_mode=pl.Buffered(1) supported for constant blocks?
# (Review item 1: single-buffer the never-changing weight/bias blocks.)
# ----------------------------------------------------------------------------
@functools.lru_cache(maxsize=None)
def _buffered1_supported():
    try:
        w_spec = pl.BlockSpec((8, 128), lambda i: (0, 0),
                              pipeline_mode=pl.Buffered(1))

        def k(w_ref, x_ref, o_ref):
            o_ref[...] = x_ref[...] + w_ref[...]

        f = pl.pallas_call(
            k,
            out_shape=jax.ShapeDtypeStruct((16, 128), jnp.float32),
            grid=(2,),
            in_specs=[w_spec, pl.BlockSpec((8, 128), lambda i: (i, 0))],
            out_specs=pl.BlockSpec((8, 128), lambda i: (i, 0)),
        )
        w = jnp.full((8, 128), 2.0, jnp.float32)
        x = jnp.ones((16, 128), jnp.float32)
        out = jax.block_until_ready(f(w, x))
        return bool(jnp.allclose(out, 3.0))
    except Exception:
        return False


# ----------------------------------------------------------------------------
# Tile-height selection with an explicit in-kernel VMEM model (review item 8)
# ----------------------------------------------------------------------------
def _choose_tile_h(H, W, K, pad, cins, cout, out_itemsize, cout_one,
                   tile_h=None):
    if tile_h is not None:
        th = int(tile_h)
    else:
        Wp = W + 2 * pad
        if cout_one:
            c = cins[0]
            in_row = c * Wp * 2 * 3          # bf16 block: 2 pipeline bufs + load
            work_row = c * Wp * 4 + 2 * c * W * 4   # f32 copy + tap accumulator
            out_row = W * out_itemsize * 2
            fixed = K * K * c * 4 * 2 + (2 << 20)
        else:
            in_row = sum(cins) * Wp * 2 * 3
            work_row = cout * W * 4          # f32 accumulator
            for c in cins:
                pf = 9 if c < 64 else (3 if c < 256 else 1)
                # K dx-shift copies + ~2 live packed slabs
                work_row += (K * c + 2 * pf * c) * W * 2
            out_row = cout * W * out_itemsize * 2
            wbuf = 1 if _buffered1_supported() else 2
            fixed = K * K * sum(cins) * cout * 2 * wbuf + (2 << 20)
        per_row = in_row + work_row + out_row
        avail = max(_TILE_BUDGET - fixed - 2 * pad * in_row, per_row * 8)
        th = max(8, int(avail // per_row) // 8 * 8)
        th = min(th, 1024)

    if th >= H:
        return H, 1
    n_tiles = -(-H // th)
    if tile_h is None and n_tiles > 1:
        # rebalance so the last tile is not mostly padding
        th = max(8, (-(-(-(-H // n_tiles)) // 8)) * 8)
        n_tiles = -(-H // th)
    return th, n_tiles


# ----------------------------------------------------------------------------
# Fused conv (+BN-folded bias, +optional ReLU) Pallas kernel
# ----------------------------------------------------------------------------
@functools.lru_cache(maxsize=None)
def _build_conv(ng, W, cins, cout, K, dil, relu, th, n_ct, cout_one,
                out_dtype_name):
    pad = dil * (K - 1) // 2
    Wp = W + 2 * pad
    rows = th + 2 * pad
    out_dtype = jnp.dtype(out_dtype_name)
    n_in = len(cins)
    cout_t = cout // n_ct
    use_b1 = _buffered1_supported()

    def _maybe_buffered(shape, index_map, constant):
        if constant and use_b1:
            return pl.BlockSpec(shape, index_map, pipeline_mode=pl.Buffered(1))
        return pl.BlockSpec(shape, index_map)

    def kernel(*refs):
        r = 0
        xins = []
        for _ in range(n_in):
            xins.append(refs[r][0])           # (rows, Wp, C) bf16
            r += 1

        if cout_one:
            w_ref = refs[r]; r += 1           # (K*K, 1, C) f32
            b_ref = refs[r]; r += 1           # (1, 1) f32
            o_ref = refs[r]
            c = cins[0]
            xf = xins[0].astype(jnp.float32)  # one convert instead of 9
            # accumulate full-channel products, single reduction at the end
            acc_full = jnp.zeros((th, W, c), jnp.float32)
            for dy in range(K):
                for dx in range(K):
                    t = dy * K + dx
                    win = xf[dy * dil:dy * dil + th, dx * dil:dx * dil + W, :]
                    acc_full = acc_full + win * w_ref[t]
            acc = jnp.sum(acc_full, axis=-1) + b_ref[...]     # (th, W)
            if relu:
                acc = jnp.maximum(acc, 0.0)
            o_ref[0] = acc.astype(out_dtype)                  # lane-dense store
            return

        w_refs = [refs[r + i] for i in range(n_in)]
        r += n_in
        b_ref = refs[r]; r += 1               # (1, cout_t) f32
        o_ref = refs[r]

        acc = None
        for x, c, w_ref in zip(xins, cins, w_refs):
            # Build the K dx-shifted row views once (sublane shifts); dy offsets
            # are free row offsets of those views.
            xdx = [x[:, dx * dil:dx * dil + W, :] for dx in range(K)]
            if c < 64:
                # pack all K*K taps into one MXU contraction
                wins = [xdx[dx][dy * dil:dy * dil + th]
                        for dy in range(K) for dx in range(K)]
                slab = wins[0] if len(wins) == 1 else jnp.concatenate(wins, -1)
                part = jnp.dot(slab.reshape(th * W, K * K * c), w_ref[...],
                               preferred_element_type=jnp.float32)
                acc = part if acc is None else acc + part
            elif c < 256:
                # pack only the dx taps: K matmuls of depth K*c
                for dy in range(K):
                    slab = jnp.concatenate(
                        [xdx[dx][dy * dil:dy * dil + th] for dx in range(K)],
                        axis=-1)
                    part = jnp.dot(slab.reshape(th * W, K * c),
                                   w_ref[dy * K * c:(dy + 1) * K * c, :],
                                   preferred_element_type=jnp.float32)
                    acc = part if acc is None else acc + part
            else:
                # per-tap matmuls: no lane-concat, depth c already saturates MXU
                for dy in range(K):
                    for dx in range(K):
                        t = dy * K + dx
                        slab = xdx[dx][dy * dil:dy * dil + th].reshape(th * W, c)
                        part = jnp.dot(slab, w_ref[t * c:(t + 1) * c, :],
                                       preferred_element_type=jnp.float32)
                        acc = part if acc is None else acc + part

        acc = acc + b_ref[...]
        if relu:
            acc = jnp.maximum(acc, 0.0)
        o_ref[0] = acc.reshape(th, W, cout_t).astype(out_dtype)

    in_specs = []
    for c in cins:
        in_specs.append(pl.BlockSpec((1, rows, Wp, c),
                                     lambda g, j: (g, 0, 0, 0)))
    if cout_one:
        in_specs.append(_maybe_buffered((K * K, 1, cins[0]),
                                        lambda g, j: (0, 0, 0), True))
        in_specs.append(_maybe_buffered((1, 1), lambda g, j: (0, 0), True))
        out_specs = pl.BlockSpec((1, th, W), lambda g, j: (g, 0, 0))
        out_shape = jax.ShapeDtypeStruct((ng, th, W), out_dtype)
    else:
        for c in cins:
            in_specs.append(_maybe_buffered((K * K * c, cout_t),
                                            lambda g, j: (0, j), n_ct == 1))
        in_specs.append(_maybe_buffered((1, cout_t), lambda g, j: (0, j),
                                        n_ct == 1))
        out_specs = pl.BlockSpec((1, th, W, cout_t), lambda g, j: (g, 0, 0, j))
        out_shape = jax.ShapeDtypeStruct((ng, th, W, cout), out_dtype)

    flops = 2 * ng * th * W * K * K * sum(cins) * cout
    bytes_in = sum(ng * rows * Wp * c * 2 for c in cins)
    bytes_w = K * K * sum(cins) * cout * (4 if cout_one else 2) + 4 * cout
    bytes_out = ng * th * W * cout * out_dtype.itemsize
    cost = pl.CostEstimate(flops=int(flops), transcendentals=0,
                           bytes_accessed=int(bytes_in + bytes_w + bytes_out))

    return pl.pallas_call(
        kernel,
        out_shape=out_shape,
        grid=(ng, n_ct),
        in_specs=in_specs,
        out_specs=out_specs,
        compiler_params=pltpu.CompilerParams(
            dimension_semantics=("parallel", "parallel"),
            vmem_limit_bytes=_VMEM_LIMIT,
        ),
        cost_estimate=cost,
    )


def _conv(xs, ws, b, *, K, dilation, relu, cout_one=False, tile_h=None,
          out_dtype=jnp.bfloat16, cout_tiles=None):
    """Fused conv: xs = list of NHWC activations (1 or 2, the implicit concat),
    ws = matching list of (K,K,Ci,Cout) weights (BN already folded), b (Cout,)."""
    xs, ws = list(xs), list(ws)
    N, H, W = (int(xs[0].shape[0]), int(xs[0].shape[1]), int(xs[0].shape[2]))
    cins = tuple(int(x.shape[-1]) for x in xs)
    cout = int(ws[0].shape[-1])
    if cout_one:
        assert cout == 1 and len(xs) == 1
    pad = dilation * (K - 1) // 2
    out_itemsize = jnp.dtype(out_dtype).itemsize
    th, n_tiles = _choose_tile_h(H, W, K, pad, cins, cout, out_itemsize,
                                 cout_one, tile_h)

    # Optional cout split: gives the second v7x TensorCore work when the conv
    # would otherwise be a single grid step (deep, small-H stages).
    if cout_one:
        n_ct = 1
    elif cout_tiles is not None:
        n_ct = int(cout_tiles)
    elif cout >= 512 and cout % 256 == 0 and N * n_tiles == 1:
        n_ct = 2
    else:
        n_ct = 1
    if n_ct > 1 and (cout % n_ct != 0 or (cout // n_ct) % 128 != 0):
        n_ct = 1

    rows = th + 2 * pad
    Hp = n_tiles * th + 2 * pad
    pad_bot = Hp - pad - H

    args = []
    for x in xs:
        xp = jnp.pad(x.astype(jnp.bfloat16),
                     ((0, 0), (pad, pad_bot), (pad, pad), (0, 0)))
        if n_tiles == 1:
            xt = xp
        else:
            # one fused pre-pass also lays out the overlapping row chunks, so
            # the kernel needs no halo BlockSpec and no in-kernel concat
            xt = jnp.stack([xp[:, i * th:i * th + rows]
                            for i in range(n_tiles)], axis=1)
            xt = xt.reshape(N * n_tiles, rows, W + 2 * pad, int(x.shape[-1]))
        args.append(xt)

    if cout_one:
        args.append(ws[0].astype(jnp.float32).reshape(K * K, 1, cins[0]))
        args.append(b.astype(jnp.float32).reshape(1, 1))
    else:
        for wgt in ws:
            args.append(wgt.astype(jnp.bfloat16).reshape(-1, cout))
        args.append(b.astype(jnp.float32).reshape(1, cout))

    call = _build_conv(N * n_tiles, W, cins, cout, K, dilation, bool(relu),
                       th, n_ct, bool(cout_one), jnp.dtype(out_dtype).name)
    out = call(*args)
    if cout_one:
        out = out.reshape(N, n_tiles * th, W)[:, :H, :, None]
    else:
        out = out.reshape(N, n_tiles * th, W, cout)[:, :H]
    return out


# ----------------------------------------------------------------------------
# Plain-JAX glue: maxpool (ceil_mode), bilinear upsample (align_corners=False)
# ----------------------------------------------------------------------------
def maxpool2_ceil(x):
    N, H, W, C = x.shape
    Ho, Wo = -(-H // 2), -(-W // 2)
    ph, pw = Ho * 2 - H, Wo * 2 - W
    xp = jnp.pad(x, ((0, 0), (0, ph), (0, pw), (0, 0)),
                 constant_values=-jnp.inf)
    return xp.reshape(N, Ho, 2, Wo, 2, C).max(axis=(2, 4))


def _interp_matrix(out_size, in_size):
    # PyTorch bilinear, align_corners=False (half-pixel centers), as a dense
    # matrix so the resize is two small matmuls instead of gathers.
    scale = in_size / out_size
    coords = (jnp.arange(out_size, dtype=jnp.float32) + 0.5) * scale - 0.5
    coords = jnp.clip(coords, 0.0, in_size - 1)
    lo = jnp.clip(jnp.floor(coords).astype(jnp.int32), 0, in_size - 1)
    hi = jnp.minimum(lo + 1, in_size - 1)
    frac = coords - lo.astype(jnp.float32)
    return (jax.nn.one_hot(lo, in_size, dtype=jnp.float32) * (1.0 - frac)[:, None]
            + jax.nn.one_hot(hi, in_size, dtype=jnp.float32) * frac[:, None])


def upsample_like(src, tar):
    N, Hs, Ws, C = src.shape
    Ht, Wt = tar.shape[1], tar.shape[2]
    if (Hs, Ws) == (Ht, Wt):
        return src
    dt = src.dtype
    out = src.astype(jnp.float32)
    if Hs != Ht:
        out = jnp.einsum("th,nhwc->ntwc", _interp_matrix(Ht, Hs), out)
    if Ws != Wt:
        out = jnp.einsum("sw,nhwc->nhsc", _interp_matrix(Wt, Ws), out)
    return out.astype(dt)


# ----------------------------------------------------------------------------
# Parameter construction (deterministic, synthetic)
# ----------------------------------------------------------------------------
class KeyGen:
    def __init__(self, seed=0):
        self.key = jax.random.PRNGKey(seed)

    def __call__(self):
        self.key, sub = jax.random.split(self.key)
        return sub


def init_conv(kg, in_ch, out_ch, k):
    std = math.sqrt(2.0 / (k * k * in_ch))
    w = jax.random.normal(kg(), (k, k, in_ch, out_ch), jnp.float32) * std
    b = jax.random.normal(kg(), (out_ch,), jnp.float32) * 0.01
    return dict(w=w, b=b)


def init_rebn(kg, in_ch, out_ch):
    p = init_conv(kg, in_ch, out_ch, 3)
    p["gamma"] = 1.0 + 0.1 * jax.random.normal(kg(), (out_ch,), jnp.float32)
    p["beta"] = 0.1 * jax.random.normal(kg(), (out_ch,), jnp.float32)
    p["mean"] = 0.05 * jax.random.normal(kg(), (out_ch,), jnp.float32)
    p["var"] = 1.0 + 0.1 * jax.random.uniform(kg(), (out_ch,), jnp.float32)
    return p


def rebnconv(p, xs, dirate):
    """REBNCONV on one activation or on an (implicitly concatenated) list."""
    if not isinstance(xs, (list, tuple)):
        xs = [xs]
    eps = 1e-5
    scale = p["gamma"] / jnp.sqrt(p["var"] + eps)
    bias = (p["b"] - p["mean"]) * scale + p["beta"]
    w = p["w"] * scale                         # fold BN scale into the weights
    ws, off = [], 0
    for x in xs:                               # split along Cin: fused concat
        c = x.shape[-1]
        ws.append(w[:, :, off:off + c, :])
        off += c
    return _conv(xs, ws, bias, K=3, dilation=dirate, relu=True)


def plain_conv(p, x, K=3):
    cout = p["w"].shape[-1]
    if cout == 1:
        return _conv([x], [p["w"]], p["b"], K=K, dilation=1, relu=False,
                     cout_one=True, out_dtype=jnp.float32)
    return _conv([x], [p["w"]], p["b"], K=K, dilation=1, relu=False,
                 out_dtype=jnp.float32)


# ----------------------------------------------------------------------------
# RSU blocks
# ----------------------------------------------------------------------------
def init_rsu7(kg, in_ch, mid, out):
    return dict(
        rin=init_rebn(kg, in_ch, out),
        r1=init_rebn(kg, out, mid), r2=init_rebn(kg, mid, mid),
        r3=init_rebn(kg, mid, mid), r4=init_rebn(kg, mid, mid),
        r5=init_rebn(kg, mid, mid), r6=init_rebn(kg, mid, mid),
        r7=init_rebn(kg, mid, mid),
        r6d=init_rebn(kg, mid * 2, mid), r5d=init_rebn(kg, mid * 2, mid),
        r4d=init_rebn(kg, mid * 2, mid), r3d=init_rebn(kg, mid * 2, mid),
        r2d=init_rebn(kg, mid * 2, mid), r1d=init_rebn(kg, mid * 2, out))


def rsu7(p, x):
    hxin = rebnconv(p["rin"], x, 1)
    hx1 = rebnconv(p["r1"], hxin, 1)
    hx2 = rebnconv(p["r2"], maxpool2_ceil(hx1), 1)
    hx3 = rebnconv(p["r3"], maxpool2_ceil(hx2), 1)
    hx4 = rebnconv(p["r4"], maxpool2_ceil(hx3), 1)
    hx5 = rebnconv(p["r5"], maxpool2_ceil(hx4), 1)
    hx6 = rebnconv(p["r6"], maxpool2_ceil(hx5), 1)
    hx7 = rebnconv(p["r7"], hx6, 2)
    hx6d = rebnconv(p["r6d"], [hx7, hx6], 1)
    hx5d = rebnconv(p["r5d"], [upsample_like(hx6d, hx5), hx5], 1)
    hx4d = rebnconv(p["r4d"], [upsample_like(hx5d, hx4), hx4], 1)
    hx3d = rebnconv(p["r3d"], [upsample_like(hx4d, hx3), hx3], 1)
    hx2d = rebnconv(p["r2d"], [upsample_like(hx3d, hx2), hx2], 1)
    hx1d = rebnconv(p["r1d"], [upsample_like(hx2d, hx1), hx1], 1)
    return hx1d + hxin


def init_rsu6(kg, in_ch, mid, out):
    return dict(
        rin=init_rebn(kg, in_ch, out),
        r1=init_rebn(kg, out, mid), r2=init_rebn(kg, mid, mid),
        r3=init_rebn(kg, mid, mid), r4=init_rebn(kg, mid, mid),
        r5=init_rebn(kg, mid, mid), r6=init_rebn(kg, mid, mid),
        r5d=init_rebn(kg, mid * 2, mid), r4d=init_rebn(kg, mid * 2, mid),
        r3d=init_rebn(kg, mid * 2, mid), r2d=init_rebn(kg, mid * 2, mid),
        r1d=init_rebn(kg, mid * 2, out))


def rsu6(p, x):
    hxin = rebnconv(p["rin"], x, 1)
    hx1 = rebnconv(p["r1"], hxin, 1)
    hx2 = rebnconv(p["r2"], maxpool2_ceil(hx1), 1)
    hx3 = rebnconv(p["r3"], maxpool2_ceil(hx2), 1)
    hx4 = rebnconv(p["r4"], maxpool2_ceil(hx3), 1)
    hx5 = rebnconv(p["r5"], maxpool2_ceil(hx4), 1)
    hx6 = rebnconv(p["r6"], hx5, 2)
    hx5d = rebnconv(p["r5d"], [hx6, hx5], 1)
    hx4d = rebnconv(p["r4d"], [upsample_like(hx5d, hx4), hx4], 1)
    hx3d = rebnconv(p["r3d"], [upsample_like(hx4d, hx3), hx3], 1)
    hx2d = rebnconv(p["r2d"], [upsample_like(hx3d, hx2), hx2], 1)
    hx1d = rebnconv(p["r1d"], [upsample_like(hx2d, hx1), hx1], 1)
    return hx1d + hxin


def init_rsu5(kg, in_ch, mid, out):
    return dict(
        rin=init_rebn(kg, in_ch, out),
        r1=init_rebn(kg, out, mid), r2=init_rebn(kg, mid, mid),
        r3=init_rebn(kg, mid, mid), r4=init_rebn(kg, mid, mid),
        r5=init_rebn(kg, mid, mid),
        r4d=init_rebn(kg, mid * 2, mid), r3d=init_rebn(kg, mid * 2, mid),
        r2d=init_rebn(kg, mid * 2, mid), r1d=init_rebn(kg, mid * 2, out))


def rsu5(p, x):
    hxin = rebnconv(p["rin"], x, 1)
    hx1 = rebnconv(p["r1"], hxin, 1)
    hx2 = rebnconv(p["r2"], maxpool2_ceil(hx1), 1)
    hx3 = rebnconv(p["r3"], maxpool2_ceil(hx2), 1)
    hx4 = rebnconv(p["r4"], maxpool2_ceil(hx3), 1)
    hx5 = rebnconv(p["r5"], hx4, 2)
    hx4d = rebnconv(p["r4d"], [hx5, hx4], 1)
    hx3d = rebnconv(p["r3d"], [upsample_like(hx4d, hx3), hx3], 1)
    hx2d = rebnconv(p["r2d"], [upsample_like(hx3d, hx2), hx2], 1)
    hx1d = rebnconv(p["r1d"], [upsample_like(hx2d, hx1), hx1], 1)
    return hx1d + hxin


def init_rsu4(kg, in_ch, mid, out):
    return dict(
        rin=init_rebn(kg, in_ch, out),
        r1=init_rebn(kg, out, mid), r2=init_rebn(kg, mid, mid),
        r3=init_rebn(kg, mid, mid), r4=init_rebn(kg, mid, mid),
        r3d=init_rebn(kg, mid * 2, mid), r2d=init_rebn(kg, mid * 2, mid),
        r1d=init_rebn(kg, mid * 2, out))


def rsu4(p, x):
    hxin = rebnconv(p["rin"], x, 1)
    hx1 = rebnconv(p["r1"], hxin, 1)
    hx2 = rebnconv(p["r2"], maxpool2_ceil(hx1), 1)
    hx3 = rebnconv(p["r3"], maxpool2_ceil(hx2), 1)
    hx4 = rebnconv(p["r4"], hx3, 2)
    hx3d = rebnconv(p["r3d"], [hx4, hx3], 1)
    hx2d = rebnconv(p["r2d"], [upsample_like(hx3d, hx2), hx2], 1)
    hx1d = rebnconv(p["r1d"], [upsample_like(hx2d, hx1), hx1], 1)
    return hx1d + hxin


def init_rsu4f(kg, in_ch, mid, out):
    return dict(
        rin=init_rebn(kg, in_ch, out),
        r1=init_rebn(kg, out, mid), r2=init_rebn(kg, mid, mid),
        r3=init_rebn(kg, mid, mid), r4=init_rebn(kg, mid, mid),
        r3d=init_rebn(kg, mid * 2, mid), r2d=init_rebn(kg, mid * 2, mid),
        r1d=init_rebn(kg, mid * 2, out))


def rsu4f(p, x):
    hxin = rebnconv(p["rin"], x, 1)
    hx1 = rebnconv(p["r1"], hxin, 1)
    hx2 = rebnconv(p["r2"], hx1, 2)
    hx3 = rebnconv(p["r3"], hx2, 4)
    hx4 = rebnconv(p["r4"], hx3, 8)
    hx3d = rebnconv(p["r3d"], [hx4, hx3], 4)
    hx2d = rebnconv(p["r2d"], [hx3d, hx2], 2)
    hx1d = rebnconv(p["r1d"], [hx2d, hx1], 1)
    return hx1d + hxin


# ----------------------------------------------------------------------------
# U2NET
# ----------------------------------------------------------------------------
def init_u2net(kg, in_ch=3, out_ch=1):
    return dict(
        stage1=init_rsu7(kg, in_ch, 32, 64),
        stage2=init_rsu6(kg, 64, 32, 128),
        stage3=init_rsu5(kg, 128, 64, 256),
        stage4=init_rsu4(kg, 256, 128, 512),
        stage5=init_rsu4f(kg, 512, 256, 512),
        stage6=init_rsu4f(kg, 512, 256, 512),
        stage5d=init_rsu4f(kg, 1024, 256, 512),
        stage4d=init_rsu4(kg, 1024, 128, 256),
        stage3d=init_rsu5(kg, 512, 64, 128),
        stage2d=init_rsu6(kg, 256, 32, 64),
        stage1d=init_rsu7(kg, 128, 16, 64),
        side1=init_conv(kg, 64, out_ch, 3),
        side2=init_conv(kg, 64, out_ch, 3),
        side3=init_conv(kg, 128, out_ch, 3),
        side4=init_conv(kg, 256, out_ch, 3),
        side5=init_conv(kg, 512, out_ch, 3),
        side6=init_conv(kg, 512, out_ch, 3),
        outconv=init_conv(kg, 6 * out_ch, out_ch, 1),
    )


def u2net_apply(p, x_nchw):
    x = jnp.transpose(x_nchw, (0, 2, 3, 1)).astype(jnp.bfloat16)   # -> NHWC
    hx1 = rsu7(p["stage1"], x)
    hx2 = rsu6(p["stage2"], maxpool2_ceil(hx1))
    hx3 = rsu5(p["stage3"], maxpool2_ceil(hx2))
    hx4 = rsu4(p["stage4"], maxpool2_ceil(hx3))
    hx5 = rsu4f(p["stage5"], maxpool2_ceil(hx4))
    hx6 = rsu4f(p["stage6"], maxpool2_ceil(hx5))

    hx5d = rsu4f(p["stage5d"], [upsample_like(hx6, hx5), hx5])
    hx4d = rsu4(p["stage4d"], [upsample_like(hx5d, hx4), hx4])
    hx3d = rsu5(p["stage3d"], [upsample_like(hx4d, hx3), hx3])
    hx2d = rsu6(p["stage2d"], [upsample_like(hx3d, hx2), hx2])
    hx1d = rsu7(p["stage1d"], [upsample_like(hx2d, hx1), hx1])

    d1 = plain_conv(p["side1"], hx1d)
    d2 = upsample_like(plain_conv(p["side2"], hx2d), d1)
    d3 = upsample_like(plain_conv(p["side3"], hx3d), d1)
    d4 = upsample_like(plain_conv(p["side4"], hx4d), d1)
    d5 = upsample_like(plain_conv(p["side5"], hx5d), d1)
    d6 = upsample_like(plain_conv(p["side6"], hx6), d1)
    d0 = plain_conv(p["outconv"],
                    jnp.concatenate([d1, d2, d3, d4, d5, d6], -1), K=1)

    outs = tuple(jax.nn.sigmoid(d.astype(jnp.float32))
                 for d in (d0, d1, d2, d3, d4, d5, d6))
    # back to PyTorch NCHW output convention
    return tuple(jnp.transpose(o, (0, 3, 1, 2)) for o in outs)


u2net_forward = jax.jit(u2net_apply)


# ----------------------------------------------------------------------------
if __name__ == "__main__":
    def _bf16(v):
        return jnp.asarray(v, jnp.bfloat16).astype(jnp.float32)

    def _ref_conv(x, w, b, dil, relu):
        out = jax.lax.conv_general_dilated(
            _bf16(x), _bf16(w), window_strides=(1, 1),
            padding=[(dil, dil), (dil, dil)], rhs_dilation=(dil, dil),
            dimension_numbers=("NHWC", "HWIO", "NHWC"),
            precision=jax.lax.Precision.HIGHEST)
        out = out + b
        return jnp.maximum(out, 0.0) if relu else out

    def _check(got, ref, tol=5e-2):
        got = jnp.asarray(got, jnp.float32)
        ref = jnp.asarray(ref, jnp.float32)
        err = float(jnp.max(jnp.abs(got - ref)))
        scale = float(jnp.max(jnp.abs(ref))) + 1.0
        assert err <= tol * scale, ("conv mismatch", err, scale)

    ks = jax.random.split(jax.random.PRNGKey(0), 12)

    # A: fused-concat + dilation-2 + multi-tile rows (full-slab packing, Cin=8)
    xa = jax.random.normal(ks[0], (1, 32, 16, 8), jnp.float32)
    xb = jax.random.normal(ks[1], (1, 32, 16, 8), jnp.float32)
    wa = jax.random.normal(ks[2], (3, 3, 16, 24), jnp.float32) * 0.1
    ba = jax.random.normal(ks[3], (24,), jnp.float32) * 0.1
    got = _conv([xa, xb], [wa[:, :, :8], wa[:, :, 8:]], ba,
                K=3, dilation=2, relu=True, tile_h=8)
    _check(got, _ref_conv(jnp.concatenate([xa, xb], -1), wa, ba, 2, True))

    # B: dx-packed path (Cin=64), Buffered(1) constant weight block
    xc = jax.random.normal(ks[4], (1, 16, 16, 64), jnp.float32)
    wc = jax.random.normal(ks[5], (3, 3, 64, 32), jnp.float32) * 0.05
    bc = jax.random.normal(ks[6], (32,), jnp.float32) * 0.1
    got = _conv([xc], [wc], bc, K=3, dilation=1, relu=True)
    _check(got, _ref_conv(xc, wc, bc, 1, True))

    # C: per-tap path (Cin=256) + cout split across the grid (v7x megacore)
    xd = jax.random.normal(ks[7], (1, 8, 16, 256), jnp.float32)
    wd = jax.random.normal(ks[8], (3, 3, 256, 256), jnp.float32) * 0.05
    bd = jax.random.normal(ks[9], (256,), jnp.float32) * 0.1
    got = _conv([xd], [wd], bd, K=3, dilation=1, relu=True, cout_tiles=2)
    _check(got, _ref_conv(xd, wd, bd, 1, True))

    # D: cout==1 side-conv path (single reduction, lane-dense (th, W) store)
    we = jax.random.normal(ks[10], (3, 3, 64, 1), jnp.float32) * 0.05
    be = jax.random.normal(ks[11], (1,), jnp.float32) * 0.1
    got = _conv([xc], [we], be, K=3, dilation=1, relu=False,
                cout_one=True, out_dtype=jnp.float32)
    refd = jax.lax.conv_general_dilated(
        _bf16(xc), we, (1, 1), [(1, 1), (1, 1)],
        dimension_numbers=("NHWC", "HWIO", "NHWC"),
        precision=jax.lax.Precision.HIGHEST) + be
    _check(got, refd)

    # --- full U2NET forward -------------------------------------------------
    kg = KeyGen(seed=0)
    params = init_u2net(kg, in_ch=3, out_ch=1)
    x = jax.random.normal(jax.random.PRNGKey(0), (2, 3, 16, 16), jnp.float32)

    outs = jax.block_until_ready(u2net_forward(params, x))

    assert len(outs) == 7
    assert all(o.shape == (2, 1, 16, 16) for o in outs)
    assert all(bool(jnp.all(jnp.isfinite(o))) for o in outs)
    print("KERNEL_OK")
</pallas_src>

<mosaic_0001>
module attributes {stable_mosaic.version = 11 : i64} {
  func.func @k(%arg0: i32, %arg1: memref<8x128xf32, #tpu.memory_space<vmem>>, %arg2: memref<8x128xf32, #tpu.memory_space<vmem>>, %arg3: memref<8x128xf32, #tpu.memory_space<vmem>>) attributes {dimension_semantics = [#tpu.dimension_semantics<arbitrary>], iteration_bounds = array<i64: 2>, scalar_prefetch = 0 : i64, scratch_operands = 0 : i64, tpu.core_type = #tpu.core_type<tc>, window_params = [{pipeline_mode = #tpu.pipeline_mode<synchronous>, transform_indices = @transform_0, window_bounds = array<i64: 8, 128>}, {transform_indices = @transform_1, window_bounds = array<i64: 8, 128>}, {transform_indices = @transform_2, window_bounds = array<i64: 8, 128>}]} {
    %c0 = arith.constant 0 : index
    %c0_0 = arith.constant 0 : index
    %0 = vector.load %arg2[%c0, %c0_0] : memref<8x128xf32, #tpu.memory_space<vmem>>, vector<8x128xf32>
    %c0_1 = arith.constant 0 : index
    %c0_2 = arith.constant 0 : index
    %1 = vector.load %arg1[%c0_1, %c0_2] : memref<8x128xf32, #tpu.memory_space<vmem>>, vector<8x128xf32>
    %2 = arith.addf %0, %1 : vector<8x128xf32>
    %c0_3 = arith.constant 0 : index
    %c0_4 = arith.constant 0 : index
    %3 = vector.load %arg3[%c0_3, %c0_4] : memref<8x128xf32, #tpu.memory_space<vmem>>, vector<8x128xf32>
    tpu.vector_store %arg3[%c0_3, %c0_4], %2 {strides = array<i32>} : memref<8x128xf32, #tpu.memory_space<vmem>>, vector<8x128xf32>,
    return
  }
  func.func @transform_0(%arg0: i32) -> (i32, i32) {
    %c0_i32 = arith.constant 0 : i32
    %c0_i32_0 = arith.constant 0 : i32
    %c0_i32_1 = arith.constant 0 : i32
    return %c0_i32, %c0_i32_0 : i32, i32
  }
  func.func @transform_1(%arg0: i32) -> (i32, i32) {
    %c0_i32 = arith.constant 0 : i32
    %c0_i32_0 = arith.constant 0 : i32
    return %arg0, %c0_i32 : i32, i32
  }
  func.func @transform_2(%arg0: i32) -> (i32, i32) {
    %c0_i32 = arith.constant 0 : i32
    %c0_i32_0 = arith.constant 0 : i32
    return %arg0, %c0_i32 : i32, i32
  }
}

module attributes {stable_mosaic.version = 11 : i64} {
  func.func @kernel(%arg0: i32, %arg1: i32, %arg2: memref<1x12x20x8xbf16, #tpu.memory_space<vmem>>, %arg3: memref<1x12x20x8xbf16, #tpu.memory_space<vmem>>, %arg4: memref<72x24xbf16, #tpu.memory_space<vmem>>, %arg5: memref<72x24xbf16, #tpu.memory_space<vmem>>, %arg6: memref<1x24xf32, #tpu.memory_space<vmem>>, %arg7: memref<1x8x16x24xbf16, #tpu.memory_space<vmem>>) attributes {dimension_semantics = [#tpu.dimension_semantics<parallel>, #tpu.dimension_semantics<parallel>], iteration_bounds = array<i64: 4, 1>, scalar_prefetch = 0 : i64, scratch_operands = 0 : i64, tpu.core_type = #tpu.core_type<tc>, window_params = [{transform_indices = @transform_0, window_bounds = array<i64: 1, 12, 20, 8>}, {transform_indices = @transform_1, window_bounds = array<i64: 1, 12, 20, 8>}, {transform_indices = @transform_2, window_bounds = array<i64: 72, 24>}, {transform_indices = @transform_3, window_bounds = array<i64: 72, 24>}, {transform_indices = @transform_4, window_bounds = array<i64: 1, 24>}, {transform_indices = @transform_5, window_bounds = array<i64: 1, 8, 16, 24>}]} {
    %c0 = arith.constant 0 : index
    %c0_0 = arith.constant 0 : index
    %c0_1 = arith.constant 0 : index
    %c0_2 = arith.constant 0 : index
    %0 = vector.load %arg2[%c0, %c0_0, %c0_1, %c0_2] : memref<1x12x20x8xbf16, #tpu.memory_space<vmem>>, vector<1x12x20x8xbf16>
    %1 = vector.shape_cast %0 : vector<1x12x20x8xbf16> to vector<12x20x8xbf16>
    %c0_3 = arith.constant 0 : index
    %c0_4 = arith.constant 0 : index
    %c0_5 = arith.constant 0 : index
    %c0_6 = arith.constant 0 : index
    %2 = vector.load %arg3[%c0_3, %c0_4, %c0_5, %c0_6] : memref<1x12x20x8xbf16, #tpu.memory_space<vmem>>, vector<1x12x20x8xbf16>
    %3 = vector.shape_cast %2 : vector<1x12x20x8xbf16> to vector<12x20x8xbf16>
    %4 = vector.extract_strided_slice %1 {offsets = [0, 0, 0], sizes = [12, 16, 8], strides = [1, 1, 1]} : vector<12x20x8xbf16> to vector<12x16x8xbf16>
    %5 = vector.extract_strided_slice %1 {offsets = [0, 2, 0], sizes = [12, 16, 8], strides = [1, 1, 1]} : vector<12x20x8xbf16> to vector<12x16x8xbf16>
    %6 = vector.extract_strided_slice %1 {offsets = [0, 4, 0], sizes = [12, 16, 8], strides = [1, 1, 1]} : vector<12x20x8xbf16> to vector<12x16x8xbf16>
    %7 = vector.extract_strided_slice %4 {offsets = [0, 0, 0], sizes = [8, 16, 8], strides = [1, 1, 1]} : vector<12x16x8xbf16> to vector<8x16x8xbf16>
    %8 = vector.extract_strided_slice %5 {offsets = [0, 0, 0], sizes = [8, 16, 8], strides = [1, 1, 1]} : vector<12x16x8xbf16> to vector<8x16x8xbf16>
    %9 = vector.extract_strided_slice %6 {offsets = [0, 0, 0], sizes = [8, 16, 8], strides = [1, 1, 1]} : vector<12x16x8xbf16> to vector<8x16x8xbf16>
    %10 = vector.extract_strided_slice %4 {offsets = [2, 0, 0], sizes = [8, 16, 8], strides = [1, 1, 1]} : vector<12x16x8xbf16> to vector<8x16x8xbf16>
    %11 = vector.extract_strided_slice %5 {offsets = [2, 0, 0], sizes = [8, 16, 8], strides = [1, 1, 1]} : vector<12x16x8xbf16> to vector<8x16x8xbf16>
    %12 = vector.extract_strided_slice %6 {offsets = [2, 0, 0], sizes = [8, 16, 8], strides = [1, 1, 1]} : vector<12x16x8xbf16> to vector<8x16x8xbf16>
    %13 = vector.extract_strided_slice %4 {offsets = [4, 0, 0], sizes = [8, 16, 8], strides = [1, 1, 1]} : vector<12x16x8xbf16> to vector<8x16x8xbf16>
    %14 = vector.extract_strided_slice %5 {offsets = [4, 0, 0], sizes = [8, 16, 8], strides = [1, 1, 1]} : vector<12x16x8xbf16> to vector<8x16x8xbf16>
    %15 = vector.extract_strided_slice %6 {offsets = [4, 0, 0], sizes = [8, 16, 8], strides = [1, 1, 1]} : vector<12x16x8xbf16> to vector<8x16x8xbf16>
    %16 = tpu.concatenate %7, %8, %9, %10, %11, %12, %13, %14, %15 in 2 : vector<8x16x8xbf16>, vector<8x16x8xbf16>, vector<8x16x8xbf16>, vector<8x16x8xbf16>, vector<8x16x8xbf16>, vector<8x16x8xbf16>, vector<8x16x8xbf16>, vector<8x16x8xbf16>, vector<8x16x8xbf16> -> vector<8x16x72xbf16>
    %17 = vector.shape_cast %16 : vector<8x16x72xbf16> to vector<128x72xbf16>
    %c0_7 = arith.constant 0 : index
    %c0_8 = arith.constant 0 : index
    %18 = vector.load %arg4[%c0_7, %c0_8] : memref<72x24xbf16, #tpu.memory_space<vmem>>, vector<72x24xbf16>
    %cst = arith.constant dense<0.000000e+00> : vector<128x24xf32>
    %19 = tpu.matmul %17, %18, %cst {dimension_numbers = #tpu.dot_dimension_numbers<[1], [0], [0], [1], [0, 0, 1, 1], [], []>} : vector<128x72xbf16>, vector<72x24xbf16>, vector<128x24xf32> -> vector<128x24xf32>
    %20 = vector.extract_strided_slice %3 {offsets = [0, 0, 0], sizes = [12, 16, 8], strides = [1, 1, 1]} : vector<12x20x8xbf16> to vector<12x16x8xbf16>
    %21 = vector.extract_strided_slice %3 {offsets = [0, 2, 0], sizes = [12, 16, 8], strides = [1, 1, 1]} : vector<12x20x8xbf16> to vector<12x16x8xbf16>
    %22 = vector.extract_strided_slice %3 {offsets = [0, 4, 0], sizes = [12, 16, 8], strides = [1, 1, 1]} : vector<12x20x8xbf16> to vector<12x16x8xbf16>
    %23 = vector.extract_strided_slice %20 {offsets = [0, 0, 0], sizes = [8, 16, 8], strides = [1, 1, 1]} : vector<12x16x8xbf16> to vector<8x16x8xbf16>
    %24 = vector.extract_strided_slice %21 {offsets = [0, 0, 0], sizes = [8, 16, 8], strides = [1, 1, 1]} : vector<12x16x8xbf16> to vector<8x16x8xbf16>
    %25 = vector.extract_strided_slice %22 {offsets = [0, 0, 0], sizes = [8, 16, 8], strides = [1, 1, 1]} : vector<12x16x8xbf16> to vector<8x16x8xbf16>
    %26 = vector.extract_strided_slice %20 {offsets = [2, 0, 0], sizes = [8, 16, 8], strides = [1, 1, 1]} : vector<12x16x8xbf16> to vector<8x16x8xbf16>
    %27 = vector.extract_strided_slice %21 {offsets = [2, 0, 0], sizes = [8, 16, 8], strides = [1, 1, 1]} : vector<12x16x8xbf16> to vector<8x16x8xbf16>
    %28 = vector.extract_strided_slice %22 {offsets = [2, 0, 0], sizes = [8, 16, 8], strides = [1, 1, 1]} : vector<12x16x8xbf16> to vector<8x16x8xbf16>
    %29 = vector.extract_strided_slice %20 {offsets = [4, 0, 0], sizes = [8, 16, 8], strides = [1, 1, 1]} : vector<12x16x8xbf16> to vector<8x16x8xbf16>
    %30 = vector.extract_strided_slice %21 {offsets = [4, 0, 0], sizes = [8, 16, 8], strides = [1, 1, 1]} : vector<12x16x8xbf16> to vector<8x16x8xbf16>
    %31 = vector.extract_strided_slice %22 {offsets = [4, 0, 0], sizes = [8, 16, 8], strides = [1, 1, 1]} : vector<12x16x8xbf16> to vector<8x16x8xbf16>
    %32 = tpu.concatenate %23, %24, %25, %26, %27, %28, %29, %30, %31 in 2 : vector<8x16x8xbf16>, vector<8x16x8xbf16>, vector<8x16x8xbf16>, vector<8x16x8xbf16>, vector<8x16x8xbf16>, vector<8x16x8xbf16>, vector<8x16x8xbf16>, vector<8x16x8xbf16>, vector<8x16x8xbf16> -> vector<8x16x72xbf16>
    %33 = vector.shape_cast %32 : vector<8x16x72xbf16> to vector<128x72xbf16>
    %c0_9 = arith.constant 0 : index
    %c0_10 = arith.constant 0 : index
    %34 = vector.load %arg5[%c0_9, %c0_10] : memref<72x24xbf16, #tpu.memory_space<vmem>>, vector<72x24xbf16>
    %cst_11 = arith.constant dense<0.000000e+00> : vector<128x24xf32>
    %35 = tpu.matmul %33, %34, %cst_11 {dimension_numbers = #tpu.dot_dimension_numbers<[1], [0], [0], [1], [0, 0, 1, 1], [], []>} : vector<128x72xbf16>, vector<72x24xbf16>, vector<128x24xf32> -> vector<128x24xf32>
    %36 = arith.addf %19, %35 : vector<128x24xf32>
    %c0_12 = arith.constant 0 : index
    %c0_13 = arith.constant 0 : index
    %37 = vector.load %arg6[%c0_12, %c0_13] : memref<1x24xf32, #tpu.memory_space<vmem>>, vector<1x24xf32>
    %38 = vector.broadcast %37 : vector<1x24xf32> to vector<128x24xf32>
    %39 = arith.addf %36, %38 : vector<128x24xf32>
    %cst_14 = arith.constant 0.000000e+00 : f32
    %40 = vector.broadcast %cst_14 : f32 to vector<128x24xf32>
    %41 = arith.maximumf %39, %40 : vector<128x24xf32>
    %42 = vector.shape_cast %41 : vector<128x24xf32> to vector<8x16x24xf32>
    %43 = arith.truncf %42 : vector<8x16x24xf32> to vector<8x16x24xbf16>
    %c0_15 = arith.constant 0 : index
    %c0_16 = arith.constant 0 : index
    %c0_17 = arith.constant 0 : index
    %c0_18 = arith.constant 0 : index
    %44 = vector.load %arg7[%c0_15, %c0_16, %c0_17, %c0_18] : memref<1x8x16x24xbf16, #tpu.memory_space<vmem>>, vector<1x8x16x24xbf16>
    %45 = vector.shape_cast %44 : vector<1x8x16x24xbf16> to vector<8x16x24xbf16>
    %46 = vector.shape_cast %43 : vector<8x16x24xbf16> to vector<1x8x16x24xbf16>
    tpu.vector_store %arg7[%c0_15, %c0_16, %c0_17, %c0_18], %46 {strides = array<i32>} : memref<1x8x16x24xbf16, #tpu.memory_space<vmem>>, vector<1x8x16x24xbf16>,
    return
  }
  func.func @transform_0(%arg0: i32, %arg1: i32) -> (i32, i32, i32, i32) {
    %c0_i32 = arith.constant 0 : i32
    %c0_i32_0 = arith.constant 0 : i32
    %c0_i32_1 = arith.constant 0 : i32
    %c0_i32_2 = arith.constant 0 : i32
    return %arg0, %c0_i32, %c0_i32_0, %c0_i32_1 : i32, i32, i32, i32
  }
  func.func @transform_1(%arg0: i32, %arg1: i32) -> (i32, i32, i32, i32) {
    %c0_i32 = arith.constant 0 : i32
    %c0_i32_0 = arith.constant 0 : i32
    %c0_i32_1 = arith.constant 0 : i32
    %c0_i32_2 = arith.constant 0 : i32
    return %arg0, %c0_i32, %c0_i32_0, %c0_i32_1 : i32, i32, i32, i32
  }
  func.func @transform_2(%arg0: i32, %arg1: i32) -> (i32, i32) {
    %c0_i32 = arith.constant 0 : i32
    %c0_i32_0 = arith.constant 0 : i32
    return %c0_i32, %arg1 : i32, i32
  }
  func.func @transform_3(%arg0: i32, %arg1: i32) -> (i32, i32) {
    %c0_i32 = arith.constant 0 : i32
    %c0_i32_0 = arith.constant 0 : i32
    return %c0_i32, %arg1 : i32, i32
  }
  func.func @transform_4(%arg0: i32, %arg1: i32) -> (i32, i32) {
    %c0_i32 = arith.constant 0 : i32
    %c0_i32_0 = arith.constant 0 : i32
    return %c0_i32, %arg1 : i32, i32
  }
  func.func @transform_5(%arg0: i32, %arg1: i32) -> (i32, i32, i32, i32) {
    %c0_i32 = arith.constant 0 : i32
    %c0_i32_0 = arith.constant 0 : i32
    %c0_i32_1 = arith.constant 0 : i32
    return %arg0, %c0_i32, %c0_i32_0, %arg1 : i32, i32, i32, i32
  }
}

</mosaic_0001>

<llo_original>
// kernel: tpu_custom_call.1
$region0: #{tpu_custom_call.1}
  #allocation0 [shape = 'u32[]', space=smem, size = 0x4, offset = 0x4, fixed_abs, tag = 'smem constant byte address 0x4 - core index']
  #allocation1 [shape = 'u32[72,128]{1,0:T(1,128)}', space=vmem, size = 0x9000, scoped, tag = 'internal scratch']
  %s0 = inlined_call_operand.hbm [shape: f32[8,128], index: 0, kind: input, shape index: {}]
  %s1 = inlined_call_operand.hbm [shape: f32[16,128], index: 1, kind: input, shape index: {}]
  %s2 = inlined_call_operand.hbm [shape: f32[16,128], index: 2, kind: output, shape index: {}]
  %s3 = sld [smem:[#allocation0]]
  $region49: #{tpu_custom_call.1} parent=0
    _
  %s5 = ssub.s32 1, %s3
  %s6 = scalar_select 0, %s5, %s3
  $region1: #{tpu_custom_call.1} parent=0
    #allocation2 [shape = 'u8[4096]{0}', space=vmem, size = 0x1000, scoped, tag = 'input window, operand 0, single buffered']
    #allocation3 [shape = 's32[2]{0}', space=sflag, size = 0x8, scoped, tag = 'scoped memory for tpu_custom_call.1']
    #allocation4 [shape = 's32[2]{0}', space=sflag, size = 0x8, scoped, tag = 'scoped memory for tpu_custom_call.1']
    #allocation5 [shape = 'u8[8192]{0}', space=vmem, size = 0x2000, scoped, tag = 'input window, operand 1']
    #allocation6 [shape = 's32[2]{0}', space=sflag, size = 0x8, scoped, tag = 'scoped memory for tpu_custom_call.1']
    #allocation7 [shape = 'u8[8192]{0}', space=vmem, size = 0x2000, scoped, tag = 'output window, operand 0']
    %7 = vsyncpa [#allocation3], 0
    %8 = vsyncpa [#allocation6], 0
    %s9 = scalar_lea.sflag [#allocation6], 1
    %10 = vsyncpa %s9, 0
    %11 = vsyncpa [#allocation4], 0
    %s12 = scalar_lea.sflag [#allocation4], 1
    %13 = vsyncpa %s12, 0
    loop: start=0, step=1, limit=4
    $region2: #{tpu_custom_call.1} parent=1 // loop_pre_header
      _
    $region3: #{tpu_custom_call.1} parent=1 // loop_header
      %s15 = sphi 0, %s19
      %p16 = scmp.ge.s32.totalorder %s15, 4
      %s23 = sphi 0, %s23
      %s25 = sphi 0, %s23
      %s26 = sphi 0, %s25
      %s40 = sphi 0, %s26
      %s46 = sphi 0, %s48
      %s49 = sphi 0, %s46
      %s50 = sphi 0, %s49
      %s66 = sphi 0, %s50
      %s72 = sphi 0, %s74
      %s75 = sphi 0, %s72
      %s76 = sphi 0, %s75
      %s92 = sphi 0, %s76
    $region4: #{tpu_custom_call.1} parent=1 // loop_header_branch
      %18 = sbr.rel (%p16) target = $region8
    $region5: #{tpu_custom_call.1} parent=1 // loop_body
      %s20 = ssub.s32 %s15, 1
      %s21 = ssub.s32 %s15, 2
      %s22 = sadd.s32 %s15, 1
      %s24 = sadd.s32 %s23, 1
      %p27 = scmp.eq.s32.totalorder %s15, 1
      %p28 = scmp.ne.s32.totalorder %s23, %s25
      %p29 = scmp.eq.s32.totalorder %s15, 0
      %p30 = por %p28, %p29
      %p31 = scmp.ne.s32.totalorder %s23, %s25
      %p32 = scmp.eq.s32.totalorder %s20, 1
      %p33 = por %p31, %p32
      %p34 = scmp.ne.s32.totalorder %s25, %s26
      %p35 = scmp.eq.s32.totalorder %s20, 0
      %p36 = por %p34, %p35
      %p37 = scmp.ne.s32.totalorder %s25, %s26
      %p38 = scmp.eq.s32.totalorder %s21, 1
      %p39 = por %p37, %p38
      %p41 = scmp.ne.s32.totalorder %s26, %s40
      %p42 = scmp.eq.s32.totalorder %s21, 0
      %p43 = por %p41, %p42
      %s44 = ssub.s32 %s15, %s22
      %p45 = scmp.eq.s32.totalorder %s44, 0
      %s47 = sadd.s32 %s46, 1
      %s48 = scalar_select %p45, %s46, %s47
      %p51 = pneg %p45
      %p52 = scmp.eq.s32.totalorder %s15, 1
      %p53 = por %p51, %p52
      %p54 = scmp.ne.s32.totalorder %s46, %s49
      %p55 = scmp.eq.s32.totalorder %s15, 0
      %p56 = por %p54, %p55
      %p57 = scmp.ne.s32.totalorder %s46, %s49
      %p58 = scmp.eq.s32.totalorder %s20, 1
      %p59 = por %p57, %p58
      %p60 = scmp.ne.s32.totalorder %s49, %s50
      %p61 = scmp.eq.s32.totalorder %s20, 0
      %p62 = por %p60, %p61
      %p63 = scmp.ne.s32.totalorder %s49, %s50
      %p64 = scmp.eq.s32.totalorder %s21, 1
      %p65 = por %p63, %p64
      %p67 = scmp.ne.s32.totalorder %s50, %s66
      %p68 = scmp.eq.s32.totalorder %s21, 0
      %p69 = por %p67, %p68
      %s70 = ssub.s32 %s15, %s22
      %p71 = scmp.eq.s32.totalorder %s70, 0
      %s73 = sadd.s32 %s72, 1
      %s74 = scalar_select %p71, %s72, %s73
      %p77 = pneg %p71
      %p78 = scmp.eq.s32.totalorder %s15, 1
      %p79 = por %p77, %p78
      %p80 = scmp.ne.s32.totalorder %s72, %s75
      %p81 = scmp.eq.s32.totalorder %s15, 0
      %p82 = por %p80, %p81
      %p83 = scmp.ne.s32.totalorder %s72, %s75
      %p84 = scmp.eq.s32.totalorder %s20, 1
      %p85 = por %p83, %p84
      %p86 = scmp.ne.s32.totalorder %s75, %s76
      %p87 = scmp.eq.s32.totalorder %s20, 0
      %p88 = por %p86, %p87
      %p89 = scmp.ne.s32.totalorder %s75, %s76
      %p90 = scmp.eq.s32.totalorder %s21, 1
      %p91 = por %p89, %p90
      %p93 = scmp.ne.s32.totalorder %s76, %s92
      %p94 = scmp.eq.s32.totalorder %s21, 0
      %p95 = por %p93, %p94
      %p96 = scmp.le.s32.totalorder 1, %s15
      %p97 = scmp.lt.s32.totalorder %s15, 3
      %p98 = pnand %p96, %p97
      %p99 = pneg %p98
      // Predicated region
      $region9: #{tpu_custom_call.1} parent=5 // pred_check
        _
      $region10: #{tpu_custom_call.1} parent=5 // pred_check_branch
        %101 = sbr.rel (%p98) target = $region12
      $region11: #{tpu_custom_call.1} parent=5 // pred_region
        %s102 = ssub.s32 %s15, 1
        // Predicated region
        $region13: #{tpu_custom_call.1} parent=11 // pred_check
          %p103 = pneg %p36
        $region14: #{tpu_custom_call.1} parent=11 // pred_check_branch
          %105 = sbr.rel (%p103) target = $region16
        $region15: #{tpu_custom_call.1} parent=11 // pred_region
          %107 = vsyncadd [#allocation3], 0
          %s109 = sshll.u32 %s0, 4
          %s110 = int_to_ptr.hbm [resolvable:$true] %s109
          %s111 = sshll.u32 [#allocation2], 4
          %s112 = int_to_ptr.vmem [resolvable:$true] %s111
          %114 = dma.hbm_to_vmem [thread:$0]  %s110, 128, %s112, [#allocation3]
        $region16: #{tpu_custom_call.1} parent=11 // pred_fallthru
          _
      $region12: #{tpu_custom_call.1} parent=5 // pred_fallthru
        _
      %p115 = scmp.lt.s32.totalorder %s15, 2
      // Predicated region
      $region17: #{tpu_custom_call.1} parent=5 // pred_check
        %p116 = pneg %p115
      $region18: #{tpu_custom_call.1} parent=5 // pred_check_branch
        %118 = sbr.rel (%p116) target = $region20
      $region19: #{tpu_custom_call.1} parent=5 // pred_region
        // Predicated region
        $region21: #{tpu_custom_call.1} parent=19 // pred_check
          %p119 = pneg %p56
        $region22: #{tpu_custom_call.1} parent=19 // pred_check_branch
          %121 = sbr.rel (%p119) target = $region24
        $region23: #{tpu_custom_call.1} parent=19 // pred_region
          %s122 = sand.u32 %s46, 1
          %s123 = scalar_lea.sflag [#allocation6], %s122
          %s124 = sand.u32 %s46, 1
          %s125 = smul.addr %s124, 8
          %s126 = scalar_lea.vmem [#allocation5], %s125
          %128 = vsyncadd %s123, 0
          %s129 = smul.addr %s15, 8
          %s130 = scalar_lea.hbm %s1, %s129
          %s132 = sshll.u32 %s130, 4
          %s133 = int_to_ptr.hbm [resolvable:$true] %s132
          %s134 = sshll.u32 %s126, 4
          %s135 = int_to_ptr.vmem [resolvable:$true] %s134
          %137 = dma.hbm_to_vmem [thread:$0]  %s133, 128, %s135, %s123
        $region24: #{tpu_custom_call.1} parent=19 // pred_fallthru
          _
      $region20: #{tpu_custom_call.1} parent=5 // pred_fallthru
        _
      %p138 = scmp.le.s32.totalorder 1, %s15
      %p139 = scmp.lt.s32.totalorder %s15, 3
      %p140 = pnand %p138, %p139
      %p141 = pneg %p140
      // Predicated region
      $region25: #{tpu_custom_call.1} parent=5 // pred_check
        _
      $region26: #{tpu_custom_call.1} parent=5 // pred_check_branch
        %143 = sbr.rel (%p140) target = $region28
      $region27: #{tpu_custom_call.1} parent=5 // pred_region
        %s144 = ssub.s32 %s15, 1
        // Predicated region
        $region29: #{tpu_custom_call.1} parent=27 // pred_check
          %p145 = pneg %p36
        $region30: #{tpu_custom_call.1} parent=27 // pred_check_branch
          %147 = sbr.rel (%p145) target = $region32
        $region31: #{tpu_custom_call.1} parent=27 // pred_region
          %149 = dma.done [#allocation3], 128
        $region32: #{tpu_custom_call.1} parent=27 // pred_fallthru
          _
        %s150 = sand.u32 %s49, 1
        %s151 = scalar_lea.sflag [#allocation6], %s150
        %s152 = sand.u32 %s49, 1
        %s153 = smul.addr %s152, 8
        %s154 = scalar_lea.vmem [#allocation5], %s153
        // Predicated region
        $region33: #{tpu_custom_call.1} parent=27 // pred_check
          %p155 = pneg %p62
        $region34: #{tpu_custom_call.1} parent=27 // pred_check_branch
          %157 = sbr.rel (%p155) target = $region36
        $region35: #{tpu_custom_call.1} parent=27 // pred_region
          %159 = dma.done %s151, 128
        $region36: #{tpu_custom_call.1} parent=27 // pred_fallthru
          _
        %p160 = pneg %p36
        %p161 = pneg %p33
        %s162 = sand.u32 %s49, 1
        %s163 = scalar_lea.sflag [#allocation6], %s162
        %s164 = sand.u32 %s49, 1
        %s165 = smul.addr %s164, 8
        %s166 = scalar_lea.vmem [#allocation5], %s165
        %p167 = pneg %p62
        %p168 = pneg %p59
        %p169 = pneg %p88
        %p170 = pneg %p85
        %s171 = sand.u32 %s75, 1
        %s172 = scalar_lea.sflag [#allocation4], %s171
        %s173 = sand.u32 %s75, 1
        %s174 = smul.addr %s173, 8
        %s175 = scalar_lea.vmem [#allocation7], %s174
        %v176 = vld [vmem:[%s154] sm:$0xff]
        %v177 = vld [vmem:[#allocation2] sm:$0xff]
        %v178 = vadd.f32 %v176, %v177
        %179 = vst [vmem:[%s175] sm:$0xff] %v178
        %s180 = sand.u32 %s75, 1
        %s181 = scalar_lea.sflag [#allocation4], %s180
        %s182 = sand.u32 %s75, 1
        %s183 = smul.addr %s182, 8
        %s184 = scalar_lea.vmem [#allocation7], %s183
        // Predicated region
        $region37: #{tpu_custom_call.1} parent=27 // pred_check
          %p185 = pneg %p85
        $region38: #{tpu_custom_call.1} parent=27 // pred_check_branch
          %187 = sbr.rel (%p185) target = $region40
        $region39: #{tpu_custom_call.1} parent=27 // pred_region
          %189 = vsyncadd %s181, 0
          %s190 = smul.addr %s20, 8
          %s191 = scalar_lea.hbm %s2, %s190
          %s193 = sshll.u32 %s184, 4
          %s194 = int_to_ptr.vmem [resolvable:$true] %s193
          %s195 = sshll.u32 %s191, 4
          %s196 = int_to_ptr.hbm [resolvable:$true] %s195
          %198 = dma.vmem_to_hbm [thread:$0]  %s194, 128, %s196, %s181
        $region40: #{tpu_custom_call.1} parent=27 // pred_fallthru
          _
      $region28: #{tpu_custom_call.1} parent=5 // pred_fallthru
        _
      %p199 = scmp.le.s32.totalorder 2, %s15
      // Predicated region
      $region41: #{tpu_custom_call.1} parent=5 // pred_check
        %p200 = pneg %p199
      $region42: #{tpu_custom_call.1} parent=5 // pred_check_branch
        %202 = sbr.rel (%p200) target = $region44
      $region43: #{tpu_custom_call.1} parent=5 // pred_region
        %s203 = ssub.s32 %s15, 2
        // Predicated region
        $region45: #{tpu_custom_call.1} parent=43 // pred_check
          %p204 = pneg %p91
        $region46: #{tpu_custom_call.1} parent=43 // pred_check_branch
          %206 = sbr.rel (%p204) target = $region48
        $region47: #{tpu_custom_call.1} parent=43 // pred_region
          %s207 = sand.u32 %s76, 1
          %s208 = scalar_lea.sflag [#allocation4], %s207
          %s209 = sand.u32 %s76, 1
          %s210 = smul.addr %s209, 8
          %s211 = scalar_lea.vmem [#allocation7], %s210
          %213 = dma.done %s208, 128
        $region48: #{tpu_custom_call.1} parent=43 // pred_fallthru
          _
      $region44: #{tpu_custom_call.1} parent=5 // pred_fallthru
        _
    $region6: #{tpu_custom_call.1} parent=1 // loop_footer
      %s19 = sadd.s32 1, %s15
    $region7: #{tpu_custom_call.1} parent=1 // loop_footer_branch
      %14 = sbr.rel target = $region3
    $region8: #{tpu_custom_call.1} parent=1 // loop_exit
      _
    %214 = vsyncpa [#allocation3], 1
    %s215 = scalar_lea.sflag [#allocation3], 1
    %216 = vsyncpa %s215, 1
    %217 = vsyncpa [#allocation6], 1
    %s218 = scalar_lea.sflag [#allocation6], 1
    %219 = vsyncpa %s218, 1
    %220 = vsyncpa [#allocation4], 1
    %s221 = scalar_lea.sflag [#allocation4], 1
    %222 = vsyncpa %s221, 1

// kernel: tpu_custom_call.1
$region0: #{tpu_custom_call.1}
  #allocation0 [shape = 'u32[]', space=smem, size = 0x4, offset = 0x4, fixed_abs, tag = 'smem constant byte address 0x4 - core index']
  #allocation1 [shape = 'u32[72,128]{1,0:T(1,128)}', space=vmem, size = 0x9000, scoped, tag = 'internal scratch']
  %s0 = inlined_call_operand.vmem [shape: bf16[4,12,20,8], index: 0, kind: input, shape index: {}]
  %s1 = inlined_call_operand.vmem [shape: bf16[4,12,20,8], index: 1, kind: input, shape index: {}]
  %s2 = inlined_call_operand.vmem [shape: bf16[72,24], index: 2, kind: input, shape index: {}]
  %s3 = inlined_call_operand.vmem [shape: bf16[72,24], index: 3, kind: input, shape index: {}]
  %s4 = inlined_call_operand.vmem [shape: f32[1,24], index: 4, kind: input, shape index: {}]
  %s5 = inlined_call_operand.hbm [shape: bf16[4,8,16,24], index: 5, kind: output, shape index: {}]
  %s6 = sld [smem:[#allocation0]]
  $region53: #{tpu_custom_call.1} parent=0
    _
  %s8 = ssub.s32 1, %s6
  %s9 = scalar_select 0, %s8, %s6
  $region1: #{tpu_custom_call.1} parent=0
    #allocation2 [shape = 'u8[65536]{0}', space=vmem, size = 0x10000, scoped, tag = 'output window, operand 0']
    #allocation3 [shape = 's32[2]{0}', space=sflag, size = 0x8, scoped, tag = 'scoped memory for tpu_custom_call.1']
    %10 = vsyncpa [#allocation3], 0
    %s11 = scalar_lea.sflag [#allocation3], 1
    %12 = vsyncpa %s11, 0
    loop: start=0, step=1, limit=6
    $region2: #{tpu_custom_call.1} parent=1 // loop_pre_header
      _
    $region3: #{tpu_custom_call.1} parent=1 // loop_header
      %s14 = sphi 0, %s18
      %p15 = scmp.ge.s32.totalorder %s14, 6
      %s21 = sphi 0, %s33
      %s22 = sphi 0, %s29
      %s23 = sphi 0, %s21
      %s24 = sphi 0, %s22
      %s25 = sphi 0, %s23
      %s26 = sphi 0, %s24
      %s36 = sphi 0, %s38
      %s39 = sphi 0, %s36
      %s40 = sphi 0, %s39
      %s56 = sphi 0, %s40
      %s62 = sphi 0, %s64
      %s65 = sphi 0, %s62
      %s66 = sphi 0, %s65
      %s82 = sphi 0, %s66
      %s88 = sphi 0, %s90
      %s91 = sphi 0, %s88
      %s92 = sphi 0, %s91
      %s108 = sphi 0, %s92
      %s114 = sphi 0, %s116
      %s117 = sphi 0, %s114
      %s118 = sphi 0, %s117
      %s134 = sphi 0, %s118
      %s140 = sphi 0, %s142
      %s143 = sphi 0, %s140
      %s144 = sphi 0, %s143
      %s160 = sphi 0, %s144
      %s168 = sphi 0, %s170
      %s171 = sphi 0, %s168
      %s172 = sphi 0, %s171
      %s188 = sphi 0, %s172
    $region4: #{tpu_custom_call.1} parent=1 // loop_header_branch
      %17 = sbr.rel (%p15) target = $region8
    $region5: #{tpu_custom_call.1} parent=1 // loop_body
      %s19 = ssub.s32 %s14, 1
      %s20 = ssub.s32 %s14, 2
      %s27 = sadd.s32 1, %s22
      %p28 = scmp.ge.s32.totalorder %s27, 1
      %s29 = scalar_select %p28, 0, %s27
      %s30 = sadd.s32 1, %s21
      %s31 = scalar_select %p28, %s30, %s21
      %p32 = scmp.ge.s32.totalorder %s31, 4
      %s33 = scalar_select %p32, 0, %s31
      %s34 = ssub.s32 %s21, %s33
      %p35 = scmp.eq.s32.totalorder %s34, 0
      %s37 = sadd.s32 %s36, 1
      %s38 = scalar_select %p35, %s36, %s37
      %p41 = pneg %p35
      %p42 = scmp.eq.s32.totalorder %s14, 3
      %p43 = por %p41, %p42
      %p44 = scmp.ne.s32.totalorder %s36, %s39
      %p45 = scmp.eq.s32.totalorder %s14, 0
      %p46 = por %p44, %p45
      %p47 = scmp.ne.s32.totalorder %s36, %s39
      %p48 = scmp.eq.s32.totalorder %s19, 3
      %p49 = por %p47, %p48
      %p50 = scmp.ne.s32.totalorder %s39, %s40
      %p51 = scmp.eq.s32.totalorder %s19, 0
      %p52 = por %p50, %p51
      %p53 = scmp.ne.s32.totalorder %s39, %s40
      %p54 = scmp.eq.s32.totalorder %s20, 3
      %p55 = por %p53, %p54
      %p57 = scmp.ne.s32.totalorder %s40, %s56
      %p58 = scmp.eq.s32.totalorder %s20, 0
      %p59 = por %p57, %p58
      %s60 = ssub.s32 %s21, %s33
      %p61 = scmp.eq.s32.totalorder %s60, 0
      %s63 = sadd.s32 %s62, 1
      %s64 = scalar_select %p61, %s62, %s63
      %p67 = pneg %p61
      %p68 = scmp.eq.s32.totalorder %s14, 3
      %p69 = por %p67, %p68
      %p70 = scmp.ne.s32.totalorder %s62, %s65
      %p71 = scmp.eq.s32.totalorder %s14, 0
      %p72 = por %p70, %p71
      %p73 = scmp.ne.s32.totalorder %s62, %s65
      %p74 = scmp.eq.s32.totalorder %s19, 3
      %p75 = por %p73, %p74
      %p76 = scmp.ne.s32.totalorder %s65, %s66
      %p77 = scmp.eq.s32.totalorder %s19, 0
      %p78 = por %p76, %p77
      %p79 = scmp.ne.s32.totalorder %s65, %s66
      %p80 = scmp.eq.s32.totalorder %s20, 3
      %p81 = por %p79, %p80
      %p83 = scmp.ne.s32.totalorder %s66, %s82
      %p84 = scmp.eq.s32.totalorder %s20, 0
      %p85 = por %p83, %p84
      %s86 = ssub.s32 %s22, %s29
      %p87 = scmp.eq.s32.totalorder %s86, 0
      %s89 = sadd.s32 %s88, 1
      %s90 = scalar_select %p87, %s88, %s89
      %p93 = pneg %p87
      %p94 = scmp.eq.s32.totalorder %s14, 3
      %p95 = por %p93, %p94
      %p96 = scmp.ne.s32.totalorder %s88, %s91
      %p97 = scmp.eq.s32.totalorder %s14, 0
      %p98 = por %p96, %p97
      %p99 = scmp.ne.s32.totalorder %s88, %s91
      %p100 = scmp.eq.s32.totalorder %s19, 3
      %p101 = por %p99, %p100
      %p102 = scmp.ne.s32.totalorder %s91, %s92
      %p103 = scmp.eq.s32.totalorder %s19, 0
      %p104 = por %p102, %p103
      %p105 = scmp.ne.s32.totalorder %s91, %s92
      %p106 = scmp.eq.s32.totalorder %s20, 3
      %p107 = por %p105, %p106
      %p109 = scmp.ne.s32.totalorder %s92, %s108
      %p110 = scmp.eq.s32.totalorder %s20, 0
      %p111 = por %p109, %p110
      %s112 = ssub.s32 %s22, %s29
      %p113 = scmp.eq.s32.totalorder %s112, 0
      %s115 = sadd.s32 %s114, 1
      %s116 = scalar_select %p113, %s114, %s115
      %p119 = pneg %p113
      %p120 = scmp.eq.s32.totalorder %s14, 3
      %p121 = por %p119, %p120
      %p122 = scmp.ne.s32.totalorder %s114, %s117
      %p123 = scmp.eq.s32.totalorder %s14, 0
      %p124 = por %p122, %p123
      %p125 = scmp.ne.s32.totalorder %s114, %s117
      %p126 = scmp.eq.s32.totalorder %s19, 3
      %p127 = por %p125, %p126
      %p128 = scmp.ne.s32.totalorder %s117, %s118
      %p129 = scmp.eq.s32.totalorder %s19, 0
      %p130 = por %p128, %p129
      %p131 = scmp.ne.s32.totalorder %s117, %s118
      %p132 = scmp.eq.s32.totalorder %s20, 3
      %p133 = por %p131, %p132
      %p135 = scmp.ne.s32.totalorder %s118, %s134
      %p136 = scmp.eq.s32.totalorder %s20, 0
      %p137 = por %p135, %p136
      %s138 = ssub.s32 %s22, %s29
      %p139 = scmp.eq.s32.totalorder %s138, 0
      %s141 = sadd.s32 %s140, 1
      %s142 = scalar_select %p139, %s140, %s141
      %p145 = pneg %p139
      %p146 = scmp.eq.s32.totalorder %s14, 3
      %p147 = por %p145, %p146
      %p148 = scmp.ne.s32.totalorder %s140, %s143
      %p149 = scmp.eq.s32.totalorder %s14, 0
      %p150 = por %p148, %p149
      %p151 = scmp.ne.s32.totalorder %s140, %s143
      %p152 = scmp.eq.s32.totalorder %s19, 3
      %p153 = por %p151, %p152
      %p154 = scmp.ne.s32.totalorder %s143, %s144
      %p155 = scmp.eq.s32.totalorder %s19, 0
      %p156 = por %p154, %p155
      %p157 = scmp.ne.s32.totalorder %s143, %s144
      %p158 = scmp.eq.s32.totalorder %s20, 3
      %p159 = por %p157, %p158
      %p161 = scmp.ne.s32.totalorder %s144, %s160
      %p162 = scmp.eq.s32.totalorder %s20, 0
      %p163 = por %p161, %p162
      %s164 = ssub.s32 %s21, %s33
      %s165 = ssub.s32 %s22, %s29
      %s166 = sor.u32 %s164, %s165
      %p167 = scmp.eq.s32.totalorder %s166, 0
      %s169 = sadd.s32 %s168, 1
      %s170 = scalar_select %p167, %s168, %s169
      %p173 = pneg %p167
      %p174 = scmp.eq.s32.totalorder %s14, 3
      %p175 = por %p173, %p174
      %p176 = scmp.ne.s32.totalorder %s168, %s171
      %p177 = scmp.eq.s32.totalorder %s14, 0
      %p178 = por %p176, %p177
      %p179 = scmp.ne.s32.totalorder %s168, %s171
      %p180 = scmp.eq.s32.totalorder %s19, 3
      %p181 = por %p179, %p180
      %p182 = scmp.ne.s32.totalorder %s171, %s172
      %p183 = scmp.eq.s32.totalorder %s19, 0
      %p184 = por %p182, %p183
      %p185 = scmp.ne.s32.totalorder %s171, %s172
      %p186 = scmp.eq.s32.totalorder %s20, 3
      %p187 = por %p185, %p186
      %p189 = scmp.ne.s32.totalorder %s172, %s188
      %p190 = scmp.eq.s32.totalorder %s20, 0
      %p191 = por %p189, %p190
      %p192 = scmp.le.s32.totalorder 1, %s14
      %p193 = scmp.lt.s32.totalorder %s14, 5
      %p194 = pnand %p192, %p193
      %p195 = pneg %p194
      // Predicated region
      $region9: #{tpu_custom_call.1} parent=5 // pred_check
        _
      $region10: #{tpu_custom_call.1} parent=5 // pred_check_branch
        %197 = sbr.rel (%p194) target = $region12
      $region11: #{tpu_custom_call.1} parent=5 // pred_region
        %s198 = ssub.s32 %s14, 1
        // Predicated region
        $region13: #{tpu_custom_call.1} parent=11 // pred_check
          %p199 = pneg %p104
        $region14: #{tpu_custom_call.1} parent=11 // pred_check_branch
          %201 = sbr.rel (%p199) target = $region16
        $region15: #{tpu_custom_call.1} parent=11 // pred_region
          %p202 = scmp.lt.s32.totalorder %s24, 0
          %s203 = scalar_select %p202, %s24, 0
          %s204 = smul.addr %s203, 4
          %s205 = scalar_lea.vmem %s2, %s204
        $region16: #{tpu_custom_call.1} parent=11 // pred_fallthru
          _
        // Predicated region
        $region17: #{tpu_custom_call.1} parent=11 // pred_check
          %p206 = pneg %p130
        $region18: #{tpu_custom_call.1} parent=11 // pred_check_branch
          %208 = sbr.rel (%p206) target = $region20
        $region19: #{tpu_custom_call.1} parent=11 // pred_region
          %p209 = scmp.lt.s32.totalorder %s24, 0
          %s210 = scalar_select %p209, %s24, 0
          %s211 = smul.addr %s210, 4
          %s212 = scalar_lea.vmem %s3, %s211
        $region20: #{tpu_custom_call.1} parent=11 // pred_fallthru
          _
        // Predicated region
        $region21: #{tpu_custom_call.1} parent=11 // pred_check
          %p213 = pneg %p156
        $region22: #{tpu_custom_call.1} parent=11 // pred_check_branch
          %215 = sbr.rel (%p213) target = $region24
        $region23: #{tpu_custom_call.1} parent=11 // pred_region
          %p216 = scmp.lt.s32.totalorder %s24, 0
          %s217 = scalar_select %p216, %s24, 0
          %s218 = scalar_lea.vmem %s4, %s217
        $region24: #{tpu_custom_call.1} parent=11 // pred_fallthru
          _
      $region12: #{tpu_custom_call.1} parent=5 // pred_fallthru
        _
      %p219 = scmp.lt.s32.totalorder %s14, 4
      // Predicated region
      $region25: #{tpu_custom_call.1} parent=5 // pred_check
        %p220 = pneg %p219
      $region26: #{tpu_custom_call.1} parent=5 // pred_check_branch
        %222 = sbr.rel (%p220) target = $region28
      $region27: #{tpu_custom_call.1} parent=5 // pred_region
        // Predicated region
        $region29: #{tpu_custom_call.1} parent=27 // pred_check
          %p223 = pneg %p46
        $region30: #{tpu_custom_call.1} parent=27 // pred_check_branch
          %225 = sbr.rel (%p223) target = $region32
        $region31: #{tpu_custom_call.1} parent=27 // pred_region
          %p226 = scmp.lt.s32.totalorder %s21, 3
          %s227 = scalar_select %p226, %s21, 3
          %s228 = smul.addr %s227, 36
          %s229 = smul.addr %s228, 4
          %s230 = scalar_lea.vmem %s0, %s229
        $region32: #{tpu_custom_call.1} parent=27 // pred_fallthru
          _
        // Predicated region
        $region33: #{tpu_custom_call.1} parent=27 // pred_check
          %p231 = pneg %p72
        $region34: #{tpu_custom_call.1} parent=27 // pred_check_branch
          %233 = sbr.rel (%p231) target = $region36
        $region35: #{tpu_custom_call.1} parent=27 // pred_region
          %p234 = scmp.lt.s32.totalorder %s21, 3
          %s235 = scalar_select %p234, %s21, 3
          %s236 = smul.addr %s235, 36
          %s237 = smul.addr %s236, 4
          %s238 = scalar_lea.vmem %s1, %s237
        $region36: #{tpu_custom_call.1} parent=27 // pred_fallthru
          _
      $region28: #{tpu_custom_call.1} parent=5 // pred_fallthru
        _
      %p239 = scmp.le.s32.totalorder 1, %s14
      %p240 = scmp.lt.s32.totalorder %s14, 5
      %p241 = pnand %p239, %p240
      %p242 = pneg %p241
      // Predicated region
      $region37: #{tpu_custom_call.1} parent=5 // pred_check
        _
      $region38: #{tpu_custom_call.1} parent=5 // pred_check_branch
        %244 = sbr.rel (%p241) target = $region40
      $region39: #{tpu_custom_call.1} parent=5 // pred_region
        %s245 = ssub.s32 %s14, 1
        %p246 = scmp.lt.s32.totalorder %s23, 3
        %s247 = scalar_select %p246, %s23, 3
        %s248 = smul.addr %s247, 36
        %s249 = smul.addr %s248, 4
        %s250 = scalar_lea.vmem %s0, %s249
        %p251 = pneg %p52
        %p252 = pneg %p49
        %p253 = scmp.lt.s32.totalorder %s23, 3
        %s254 = scalar_select %p253, %s23, 3
        %s255 = smul.addr %s254, 36
        %s256 = smul.addr %s255, 4
        %s257 = scalar_lea.vmem %s1, %s256
        %p258 = pneg %p78
        %p259 = pneg %p75
        %p260 = scmp.lt.s32.totalorder %s24, 0
        %s261 = scalar_select %p260, %s24, 0
        %s262 = smul.addr %s261, 4
        %s263 = scalar_lea.vmem %s2, %s262
        %p264 = pneg %p104
        %p265 = pneg %p101
        %p266 = scmp.lt.s32.totalorder %s24, 0
        %s267 = scalar_select %p266, %s24, 0
        %s268 = smul.addr %s267, 4
        %s269 = scalar_lea.vmem %s3, %s268
        %p270 = pneg %p130
        %p271 = pneg %p127
        %p272 = scmp.lt.s32.totalorder %s24, 0
        %s273 = scalar_select %p272, %s24, 0
        %s274 = scalar_lea.vmem %s4, %s273
        %p275 = pneg %p156
        %p276 = pneg %p153
        %p277 = pneg %p184
        %p278 = pneg %p181
        %s279 = sand.u32 %s171, 1
        %s280 = scalar_lea.sflag [#allocation3], %s279
        %s281 = sand.u32 %s171, 1
        %s282 = smul.addr %s281, 64
        %s283 = scalar_lea.vmem [#allocation2], %s282
        %p284 = scmp.lt.s32.totalorder %s23, 3
        %s285 = scalar_select %p284, %s23, 3
        %s286 = smul.addr %s285, 36
        %s287 = smul.addr %s286, 4
        %s288 = scalar_lea.vmem %s0, %s287
        %p289 = scmp.lt.s32.totalorder %s23, 3
        %s290 = scalar_select %p289, %s23, 3
        %s291 = smul.addr %s290, 36
        %s292 = smul.addr %s291, 4
        %s293 = scalar_lea.vmem %s1, %s292
        %p294 = scmp.lt.s32.totalorder %s24, 0
        %s295 = scalar_select %p294, %s24, 0
        %s296 = smul.addr %s295, 4
        %s297 = scalar_lea.vmem %s2, %s296
        %p298 = scmp.lt.s32.totalorder %s24, 0
        %s299 = scalar_select %p298, %s24, 0
        %s300 = smul.addr %s299, 4
        %s301 = scalar_lea.vmem %s3, %s300
        %p302 = scmp.lt.s32.totalorder %s24, 0
        %s303 = scalar_select %p302, %s24, 0
        %s304 = scalar_lea.vmem %s4, %s303
        %v306 = vld [vmem:[%s288] sm:$0xf]
        %v307 = vld [vmem:[%s288 + $0x4] sm:$0xf]
        %v308 = vld [vmem:[%s288 + $0x8] sm:$0x3]
        %v309 = vld [vmem:[%s288 + $0xc] sm:$0xf]
        %v310 = vld [vmem:[%s288 + $0x10] sm:$0xf]
        %v311 = vld [vmem:[%s288 + $0x14] sm:$0x3]
        %v312 = vld [vmem:[%s288 + $0x18] sm:$0xf]
        %v313 = vld [vmem:[%s288 + $0x1c] sm:$0xf]
        %v314 = vld [vmem:[%s288 + $0x20] sm:$0x3]
        %v315 = vld [vmem:[%s288 + $0x24] sm:$0xf]
        %v316 = vld [vmem:[%s288 + $0x28] sm:$0xf]
        %v317 = vld [vmem:[%s288 + $0x2c] sm:$0x3]
        %v318 = vld [vmem:[%s288 + $0x30] sm:$0xf]
        %v319 = vld [vmem:[%s288 + $0x34] sm:$0xf]
        %v320 = vld [vmem:[%s288 + $0x38] sm:$0x3]
        %v321 = vld [vmem:[%s288 + $0x3c] sm:$0xf]
        %v322 = vld [vmem:[%s288 + $0x40] sm:$0xf]
        %v323 = vld [vmem:[%s288 + $0x44] sm:$0x3]
        %v324 = vld [vmem:[%s288 + $0x48] sm:$0xf]
        %v325 = vld [vmem:[%s288 + $0x4c] sm:$0xf]
        %v326 = vld [vmem:[%s288 + $0x50] sm:$0x3]
        %v327 = vld [vmem:[%s288 + $0x54] sm:$0xf]
        %v328 = vld [vmem:[%s288 + $0x58] sm:$0xf]
        %v329 = vld [vmem:[%s288 + $0x5c] sm:$0x3]
        %v330 = vld [vmem:[%s288 + $0x60] sm:$0xf]
        %v331 = vld [vmem:[%s288 + $0x64] sm:$0xf]
        %v332 = vld [vmem:[%s288 + $0x68] sm:$0x3]
        %v333 = vld [vmem:[%s288 + $0x6c] sm:$0xf]
        %v334 = vld [vmem:[%s288 + $0x70] sm:$0xf]
        %v335 = vld [vmem:[%s288 + $0x74] sm:$0x3]
        %v336 = vld [vmem:[%s288 + $0x78] sm:$0xf]
        %v337 = vld [vmem:[%s288 + $0x7c] sm:$0xf]
        %v338 = vld [vmem:[%s288 + $0x80] sm:$0x3]
        %v339 = vld [vmem:[%s288 + $0x84] sm:$0xf]
        %v340 = vld [vmem:[%s288 + $0x88] sm:$0xf]
        %v341 = vld [vmem:[%s288 + $0x8c] sm:$0x3]
        %v342 = vld [vmem:[%s293] sm:$0xf]
        %v343 = vld [vmem:[%s293 + $0x4] sm:$0xf]
        %v344 = vld [vmem:[%s293 + $0x8] sm:$0x3]
        %v345 = vld [vmem:[%s293 + $0xc] sm:$0xf]
        %v346 = vld [vmem:[%s293 + $0x10] sm:$0xf]
        %v347 = vld [vmem:[%s293 + $0x14] sm:$0x3]
        %v348 = vld [vmem:[%s293 + $0x18] sm:$0xf]
        %v349 = vld [vmem:[%s293 + $0x1c] sm:$0xf]
        %v350 = vld [vmem:[%s293 + $0x20] sm:$0x3]
        %v351 = vld [vmem:[%s293 + $0x24] sm:$0xf]
        %v352 = vld [vmem:[%s293 + $0x28] sm:$0xf]
        %v353 = vld [vmem:[%s293 + $0x2c] sm:$0x3]
        %v354 = vld [vmem:[%s293 + $0x30] sm:$0xf]
        %v355 = vld [vmem:[%s293 + $0x34] sm:$0xf]
        %v356 = vld [vmem:[%s293 + $0x38] sm:$0x3]
        %v357 = vld [vmem:[%s293 + $0x3c] sm:$0xf]
        %v358 = vld [vmem:[%s293 + $0x40] sm:$0xf]
        %v359 = vld [vmem:[%s293 + $0x44] sm:$0x3]
        %v360 = vld [vmem:[%s293 + $0x48] sm:$0xf]
        %v361 = vld [vmem:[%s293 + $0x4c] sm:$0xf]
        %v362 = vld [vmem:[%s293 + $0x50] sm:$0x3]
        %v363 = vld [vmem:[%s293 + $0x54] sm:$0xf]
        %v364 = vld [vmem:[%s293 + $0x58] sm:$0xf]
        %v365 = vld [vmem:[%s293 + $0x5c] sm:$0x3]
        %v366 = vld [vmem:[%s293 + $0x60] sm:$0xf]
        %v367 = vld [vmem:[%s293 + $0x64] sm:$0xf]
        %v368 = vld [vmem:[%s293 + $0x68] sm:$0x3]
        %v369 = vld [vmem:[%s293 + $0x6c] sm:$0xf]
        %v370 = vld [vmem:[%s293 + $0x70] sm:$0xf]
        %v371 = vld [vmem:[%s293 + $0x74] sm:$0x3]
        %v372 = vld [vmem:[%s293 + $0x78] sm:$0xf]
        %v373 = vld [vmem:[%s293 + $0x7c] sm:$0xf]
        %v374 = vld [vmem:[%s293 + $0x80] sm:$0x3]
        %v375 = vld [vmem:[%s293 + $0x84] sm:$0xf]
        %v376 = vld [vmem:[%s293 + $0x88] sm:$0xf]
        %v377 = vld [vmem:[%s293 + $0x8c] sm:$0x3]
        %v394 = vunpack.c.l.b16 %v306
        %v395 = vunpack.c.l.b16 %v307
        %v396 = vunpack.c.l.b16 %v309
        %v397 = vunpack.c.l.b16 %v310
        %v398 = vunpack.c.l.b16 %v312
        %v399 = vunpack.c.l.b16 %v313
        %v400 = vunpack.c.l.b16 %v315
        %v401 = vunpack.c.l.b16 %v316
        %v402 = vunpack.c.l.b16 %v318
        %v403 = vunpack.c.l.b16 %v319
        %v404 = vunpack.c.l.b16 %v321
        %v405 = vunpack.c.l.b16 %v322
        %v406 = vunpack.c.l.b16 %v324
        %v407 = vunpack.c.l.b16 %v325
        %v408 = vunpack.c.l.b16 %v327
        %v409 = vunpack.c.l.b16 %v328
        %v410 = vpack.c.b16 %v395, %v394
        %v411 = vpack.c.b16 %v397, %v396
        %v412 = vpack.c.b16 %v399, %v398
        %v413 = vpack.c.b16 %v401, %v400
        %v414 = vpack.c.b16 %v403, %v402
        %v415 = vpack.c.b16 %v405, %v404
        %v416 = vpack.c.b16 %v407, %v406
        %v417 = vpack.c.b16 %v409, %v408
        %v426 = vunpack.c.l.b16 %v308
        %v427 = vunpack.c.l.b16 %v311
        %v428 = vunpack.c.l.b16 %v314
        %v429 = vunpack.c.l.b16 %v317
        %v430 = vunpack.c.l.b16 %v320
        %v431 = vunpack.c.l.b16 %v323
        %v432 = vunpack.c.l.b16 %v326
        %v433 = vunpack.c.l.b16 %v329
        %v434 = vpack.c.b16 %v426, %v426
        %v435 = vpack.c.b16 %v427, %v427
        %v436 = vpack.c.b16 %v428, %v428
        %v437 = vpack.c.b16 %v429, %v429
        %v438 = vpack.c.b16 %v430, %v430
        %v439 = vpack.c.b16 %v431, %v431
        %v440 = vpack.c.b16 %v432, %v432
        %v441 = vpack.c.b16 %v433, %v433
        %vm442 = vcmask 1046528
        %v443 = vrot.slane %v410, 1
        %v444 = vrot.slane %v434, 1
        %v445 = vsel %vm442, %v443, %v444
        %v446 = vrot.slane %v411, 1
        %v447 = vrot.slane %v435, 1
        %v448 = vsel %vm442, %v446, %v447
        %v449 = vrot.slane %v412, 1
        %v450 = vrot.slane %v436, 1
        %v451 = vsel %vm442, %v449, %v450
        %v452 = vrot.slane %v413, 1
        %v453 = vrot.slane %v437, 1
        %v454 = vsel %vm442, %v452, %v453
        %v455 = vrot.slane %v414, 1
        %v456 = vrot.slane %v438, 1
        %v457 = vsel %vm442, %v455, %v456
        %v458 = vrot.slane %v415, 1
        %v459 = vrot.slane %v439, 1
        %v460 = vsel %vm442, %v458, %v459
        %v461 = vrot.slane %v416, 1
        %v462 = vrot.slane %v440, 1
        %v463 = vsel %vm442, %v461, %v462
        %v464 = vrot.slane %v417, 1
        %v465 = vrot.slane %v441, 1
        %v466 = vsel %vm442, %v464, %v465
        %467 = vrot.lane.b32.xlu0 %v445, 8
        %v468 = vpop.permute.xlu0 %467
        %469 = vrot.lane.b32.xlu0 %v448, 8
        %v470 = vpop.permute.xlu0 %469
        %471 = vrot.lane.b32.xlu0 %v451, 8
        %v472 = vpop.permute.xlu0 %471
        %473 = vrot.lane.b32.xlu0 %v454, 8
        %v474 = vpop.permute.xlu0 %473
        %475 = vrot.lane.b32.xlu0 %v457, 8
        %v476 = vpop.permute.xlu0 %475
        %477 = vrot.lane.b32.xlu0 %v460, 8
        %v478 = vpop.permute.xlu0 %477
        %479 = vrot.lane.b32.xlu0 %v463, 8
        %v480 = vpop.permute.xlu0 %479
        %481 = vrot.lane.b32.xlu0 %v466, 8
        %v482 = vpop.permute.xlu0 %481
        %vm483 = vcmask 1045504
        %v484 = vrot.slane %v410, 2
        %v485 = vrot.slane %v434, 2
        %v486 = vsel %vm483, %v484, %v485
        %v487 = vrot.slane %v411, 2
        %v488 = vrot.slane %v435, 2
        %v489 = vsel %vm483, %v487, %v488
        %v490 = vrot.slane %v412, 2
        %v491 = vrot.slane %v436, 2
        %v492 = vsel %vm483, %v490, %v491
        %v493 = vrot.slane %v413, 2
        %v494 = vrot.slane %v437, 2
        %v495 = vsel %vm483, %v493, %v494
        %v496 = vrot.slane %v414, 2
        %v497 = vrot.slane %v438, 2
        %v498 = vsel %vm483, %v496, %v497
        %v499 = vrot.slane %v415, 2
        %v500 = vrot.slane %v439, 2
        %v501 = vsel %vm483, %v499, %v500
        %v502 = vrot.slane %v416, 2
        %v503 = vrot.slane %v440, 2
        %v504 = vsel %vm483, %v502, %v503
        %v505 = vrot.slane %v417, 2
        %v506 = vrot.slane %v441, 2
        %v507 = vsel %vm483, %v505, %v506
        %508 = vrot.lane.b32.xlu0 %v486, 16
        %v509 = vpop.permute.xlu0 %508
        %510 = vrot.lane.b32.xlu0 %v489, 16
        %v511 = vpop.permute.xlu0 %510
        %512 = vrot.lane.b32.xlu0 %v492, 16
        %v513 = vpop.permute.xlu0 %512
        %514 = vrot.lane.b32.xlu0 %v495, 16
        %v515 = vpop.permute.xlu0 %514
        %516 = vrot.lane.b32.xlu0 %v498, 16
        %v517 = vpop.permute.xlu0 %516
        %518 = vrot.lane.b32.xlu0 %v501, 16
        %v519 = vpop.permute.xlu0 %518
        %520 = vrot.lane.b32.xlu0 %v504, 16
        %v521 = vpop.permute.xlu0 %520
        %522 = vrot.lane.b32.xlu0 %v507, 16
        %v523 = vpop.permute.xlu0 %522
        %v528 = vunpack.c.l.b16 %v330
        %v529 = vunpack.c.l.b16 %v331
        %v530 = vunpack.c.l.b16 %v333
        %v531 = vunpack.c.l.b16 %v334
        %v532 = vpack.c.b16 %v529, %v528
        %v533 = vpack.c.b16 %v531, %v530
        %534 = vrot.lane.b32.xlu0 %v412, 24
        %v535 = vpop.permute.xlu0 %534
        %536 = vrot.lane.b32.xlu0 %v413, 24
        %v537 = vpop.permute.xlu0 %536
        %538 = vrot.lane.b32.xlu0 %v414, 24
        %v539 = vpop.permute.xlu0 %538
        %540 = vrot.lane.b32.xlu0 %v415, 24
        %v541 = vpop.permute.xlu0 %540
        %542 = vrot.lane.b32.xlu0 %v416, 24
        %v543 = vpop.permute.xlu0 %542
        %544 = vrot.lane.b32.xlu0 %v417, 24
        %v545 = vpop.permute.xlu0 %544
        %546 = vrot.lane.b32.xlu0 %v532, 24
        %v547 = vpop.permute.xlu0 %546
        %548 = vrot.lane.b32.xlu0 %v533, 24
        %v549 = vpop.permute.xlu0 %548
        %v552 = vunpack.c.l.b16 %v332
        %v553 = vunpack.c.l.b16 %v335
        %v554 = vpack.c.b16 %v552, %v552
        %v555 = vpack.c.b16 %v553, %v553
        %v556 = vrot.slane %v532, 1
        %v557 = vrot.slane %v554, 1
        %v558 = vsel %vm442, %v556, %v557
        %v559 = vrot.slane %v533, 1
        %v560 = vrot.slane %v555, 1
        %v561 = vsel %vm442, %v559, %v560
        %562 = vrot.lane.b32.xlu0 %v451, 32
        %v563 = vpop.permute.xlu0 %562
        %564 = vrot.lane.b32.xlu0 %v454, 32
        %v565 = vpop.permute.xlu0 %564
        %566 = vrot.lane.b32.xlu0 %v457, 32
        %v567 = vpop.permute.xlu0 %566
        %568 = vrot.lane.b32.xlu0 %v460, 32
        %v569 = vpop.permute.xlu0 %568
        %570 = vrot.lane.b32.xlu0 %v463, 32
        %v571 = vpop.permute.xlu0 %570
        %572 = vrot.lane.b32.xlu0 %v466, 32
        %v573 = vpop.permute.xlu0 %572
        %574 = vrot.lane.b32.xlu0 %v558, 32
        %v575 = vpop.permute.xlu0 %574
        %576 = vrot.lane.b32.xlu0 %v561, 32
        %v577 = vpop.permute.xlu0 %576
        %v578 = vrot.slane %v532, 2
        %v579 = vrot.slane %v554, 2
        %v580 = vsel %vm483, %v578, %v579
        %v581 = vrot.slane %v533, 2
        %v582 = vrot.slane %v555, 2
        %v583 = vsel %vm483, %v581, %v582
        %584 = vrot.lane.b32.xlu0 %v492, 40
        %v585 = vpop.permute.xlu0 %584
        %586 = vrot.lane.b32.xlu0 %v495, 40
        %v587 = vpop.permute.xlu0 %586
        %588 = vrot.lane.b32.xlu0 %v498, 40
        %v589 = vpop.permute.xlu0 %588
        %590 = vrot.lane.b32.xlu0 %v501, 40
        %v591 = vpop.permute.xlu0 %590
        %592 = vrot.lane.b32.xlu0 %v504, 40
        %v593 = vpop.permute.xlu0 %592
        %594 = vrot.lane.b32.xlu0 %v507, 40
        %v595 = vpop.permute.xlu0 %594
        %596 = vrot.lane.b32.xlu0 %v580, 40
        %v597 = vpop.permute.xlu0 %596
        %598 = vrot.lane.b32.xlu0 %v583, 40
        %v599 = vpop.permute.xlu0 %598
        %v604 = vunpack.c.l.b16 %v336
        %v605 = vunpack.c.l.b16 %v337
        %v606 = vunpack.c.l.b16 %v339
        %v607 = vunpack.c.l.b16 %v340
        %v608 = vpack.c.b16 %v605, %v604
        %v609 = vpack.c.b16 %v607, %v606
        %610 = vrot.lane.b32.xlu0 %v414, 48
        %v611 = vpop.permute.xlu0 %610
        %612 = vrot.lane.b32.xlu0 %v415, 48
        %v613 = vpop.permute.xlu0 %612
        %614 = vrot.lane.b32.xlu0 %v416, 48
        %v615 = vpop.permute.xlu0 %614
        %616 = vrot.lane.b32.xlu0 %v417, 48
        %v617 = vpop.permute.xlu0 %616
        %618 = vrot.lane.b32.xlu0 %v532, 48
        %v619 = vpop.permute.xlu0 %618
        %620 = vrot.lane.b32.xlu0 %v533, 48
        %v621 = vpop.permute.xlu0 %620
        %622 = vrot.lane.b32.xlu0 %v608, 48
        %v623 = vpop.permute.xlu0 %622
        %624 = vrot.lane.b32.xlu0 %v609, 48
        %v625 = vpop.permute.xlu0 %624
        %v628 = vunpack.c.l.b16 %v338
        %v629 = vunpack.c.l.b16 %v341
        %v630 = vpack.c.b16 %v628, %v628
        %v631 = vpack.c.b16 %v629, %v629
        %v632 = vrot.slane %v608, 1
        %v633 = vrot.slane %v630, 1
        %v634 = vsel %vm442, %v632, %v633
        %v635 = vrot.slane %v609, 1
        %v636 = vrot.slane %v631, 1
        %v637 = vsel %vm442, %v635, %v636
        %638 = vrot.lane.b32.xlu0 %v457, 56
        %v639 = vpop.permute.xlu0 %638
        %640 = vrot.lane.b32.xlu0 %v460, 56
        %v641 = vpop.permute.xlu0 %640
        %642 = vrot.lane.b32.xlu0 %v463, 56
        %v643 = vpop.permute.xlu0 %642
        %644 = vrot.lane.b32.xlu0 %v466, 56
        %v645 = vpop.permute.xlu0 %644
        %646 = vrot.lane.b32.xlu0 %v558, 56
        %v647 = vpop.permute.xlu0 %646
        %648 = vrot.lane.b32.xlu0 %v561, 56
        %v649 = vpop.permute.xlu0 %648
        %650 = vrot.lane.b32.xlu0 %v634, 56
        %v651 = vpop.permute.xlu0 %650
        %652 = vrot.lane.b32.xlu0 %v637, 56
        %v653 = vpop.permute.xlu0 %652
        %v654 = vrot.slane %v608, 2
        %v655 = vrot.slane %v630, 2
        %v656 = vsel %vm483, %v654, %v655
        %v657 = vrot.slane %v609, 2
        %v658 = vrot.slane %v631, 2
        %v659 = vsel %vm483, %v657, %v658
        %660 = vrot.lane.b32.xlu0 %v498, 64
        %v661 = vpop.permute.xlu0 %660
        %662 = vrot.lane.b32.xlu0 %v501, 64
        %v663 = vpop.permute.xlu0 %662
        %664 = vrot.lane.b32.xlu0 %v504, 64
        %v665 = vpop.permute.xlu0 %664
        %666 = vrot.lane.b32.xlu0 %v507, 64
        %v667 = vpop.permute.xlu0 %666
        %668 = vrot.lane.b32.xlu0 %v580, 64
        %v669 = vpop.permute.xlu0 %668
        %670 = vrot.lane.b32.xlu0 %v583, 64
        %v671 = vpop.permute.xlu0 %670
        %672 = vrot.lane.b32.xlu0 %v656, 64
        %v673 = vpop.permute.xlu0 %672
        %674 = vrot.lane.b32.xlu0 %v659, 64
        %v675 = vpop.permute.xlu0 %674
        %vm676 = vcmask 64512
        %v679 = vsel %vm676, %v410, %v468
        %v682 = vsel %vm676, %v411, %v470
        %v685 = vsel %vm676, %v412, %v472
        %v688 = vsel %vm676, %v413, %v474
        %v691 = vsel %vm676, %v414, %v476
        %v694 = vsel %vm676, %v415, %v478
        %v697 = vsel %vm676, %v416, %v480
        %v700 = vsel %vm676, %v417, %v482
        %vm701 = vcmask 130048
        %v703 = vsel %vm701, %v679, %v509
        %v705 = vsel %vm701, %v682, %v511
        %v707 = vsel %vm701, %v685, %v513
        %v709 = vsel %vm701, %v688, %v515
        %v711 = vsel %vm701, %v691, %v517
        %v713 = vsel %vm701, %v694, %v519
        %v715 = vsel %vm701, %v697, %v521
        %v717 = vsel %vm701, %v700, %v523
        %vm718 = vcmask 195584
        %v720 = vsel %vm718, %v703, %v535
        %v722 = vsel %vm718, %v705, %v537
        %v724 = vsel %vm718, %v707, %v539
        %v726 = vsel %vm718, %v709, %v541
        %v728 = vsel %vm718, %v711, %v543
        %v730 = vsel %vm718, %v713, %v545
        %v732 = vsel %vm718, %v715, %v547
        %v734 = vsel %vm718, %v717, %v549
        %vm735 = vcmask 261120
        %v737 = vsel %vm735, %v720, %v563
        %v739 = vsel %vm735, %v722, %v565
        %v741 = vsel %vm735, %v724, %v567
        %v743 = vsel %vm735, %v726, %v569
        %v745 = vsel %vm735, %v728, %v571
        %v747 = vsel %vm735, %v730, %v573
        %v749 = vsel %vm735, %v732, %v575
        %v751 = vsel %vm735, %v734, %v577
        %vm752 = vcmask 326656
        %v754 = vsel %vm752, %v737, %v585
        %v756 = vsel %vm752, %v739, %v587
        %v758 = vsel %vm752, %v741, %v589
        %v760 = vsel %vm752, %v743, %v591
        %v762 = vsel %vm752, %v745, %v593
        %v764 = vsel %vm752, %v747, %v595
        %v766 = vsel %vm752, %v749, %v597
        %v768 = vsel %vm752, %v751, %v599
        %vm769 = vcmask 392192
        %v771 = vsel %vm769, %v754, %v611
        %v773 = vsel %vm769, %v756, %v613
        %v775 = vsel %vm769, %v758, %v615
        %v777 = vsel %vm769, %v760, %v617
        %v779 = vsel %vm769, %v762, %v619
        %v781 = vsel %vm769, %v764, %v621
        %v783 = vsel %vm769, %v766, %v623
        %v785 = vsel %vm769, %v768, %v625
        %vm786 = vcmask 457728
        %v788 = vsel %vm786, %v771, %v639
        %v790 = vsel %vm786, %v773, %v641
        %v792 = vsel %vm786, %v775, %v643
        %v794 = vsel %vm786, %v777, %v645
        %v796 = vsel %vm786, %v779, %v647
        %v798 = vsel %vm786, %v781, %v649
        %v800 = vsel %vm786, %v783, %v651
        %v802 = vsel %vm786, %v785, %v653
        %vm803 = vcmask 523264
        %v805 = vsel %vm803, %v788, %v661
        %v807 = vsel %vm803, %v790, %v663
        %v809 = vsel %vm803, %v792, %v665
        %v811 = vsel %vm803, %v794, %v667
        %v813 = vsel %vm803, %v796, %v669
        %v815 = vsel %vm803, %v798, %v671
        %v817 = vsel %vm803, %v800, %v673
        %v819 = vsel %vm803, %v802, %v675
        %v820 = vld [vmem:[%s297] sm:$0xf]
        %v821 = vld [vmem:[%s297 + $0x4] sm:$0xf]
        %v822 = vld [vmem:[%s297 + $0x8] sm:$0xf]
        %v823 = vld [vmem:[%s297 + $0xc] sm:$0xf]
        %v824 = vld [vmem:[%s297 + $0x10] sm:$0xf]
        %v825 = vld [vmem:[%s297 + $0x14] sm:$0xf]
        %v826 = vld [vmem:[%s297 + $0x18] sm:$0xf]
        %v827 = vld [vmem:[%s297 + $0x1c] sm:$0xf]
        %v828 = vld [vmem:[%s297 + $0x20] sm:$0xf]
        %v845 = vunpack.c.l.b16 %v342
        %v846 = vunpack.c.l.b16 %v343
        %v847 = vunpack.c.l.b16 %v345
        %v848 = vunpack.c.l.b16 %v346
        %v849 = vunpack.c.l.b16 %v348
        %v850 = vunpack.c.l.b16 %v349
        %v851 = vunpack.c.l.b16 %v351
        %v852 = vunpack.c.l.b16 %v352
        %v853 = vunpack.c.l.b16 %v354
        %v854 = vunpack.c.l.b16 %v355
        %v855 = vunpack.c.l.b16 %v357
        %v856 = vunpack.c.l.b16 %v358
        %v857 = vunpack.c.l.b16 %v360
        %v858 = vunpack.c.l.b16 %v361
        %v859 = vunpack.c.l.b16 %v363
        %v860 = vunpack.c.l.b16 %v364
        %v861 = vpack.c.b16 %v846, %v845
        %v862 = vpack.c.b16 %v848, %v847
        %v863 = vpack.c.b16 %v850, %v849
        %v864 = vpack.c.b16 %v852, %v851
        %v865 = vpack.c.b16 %v854, %v853
        %v866 = vpack.c.b16 %v856, %v855
        %v867 = vpack.c.b16 %v858, %v857
        %v868 = vpack.c.b16 %v860, %v859
        %v877 = vunpack.c.l.b16 %v344
        %v878 = vunpack.c.l.b16 %v347
        %v879 = vunpack.c.l.b16 %v350
        %v880 = vunpack.c.l.b16 %v353
        %v881 = vunpack.c.l.b16 %v356
        %v882 = vunpack.c.l.b16 %v359
        %v883 = vunpack.c.l.b16 %v362
        %v884 = vunpack.c.l.b16 %v365
        %v885 = vpack.c.b16 %v877, %v877
        %v886 = vpack.c.b16 %v878, %v878
        %v887 = vpack.c.b16 %v879, %v879
        %v888 = vpack.c.b16 %v880, %v880
        %v889 = vpack.c.b16 %v881, %v881
        %v890 = vpack.c.b16 %v882, %v882
        %v891 = vpack.c.b16 %v883, %v883
        %v892 = vpack.c.b16 %v884, %v884
        %v893 = vrot.slane %v861, 1
        %v894 = vrot.slane %v885, 1
        %v895 = vsel %vm442, %v893, %v894
        %v896 = vrot.slane %v862, 1
        %v897 = vrot.slane %v886, 1
        %v898 = vsel %vm442, %v896, %v897
        %v899 = vrot.slane %v863, 1
        %v900 = vrot.slane %v887, 1
        %v901 = vsel %vm442, %v899, %v900
        %v902 = vrot.slane %v864, 1
        %v903 = vrot.slane %v888, 1
        %v904 = vsel %vm442, %v902, %v903
        %v905 = vrot.slane %v865, 1
        %v906 = vrot.slane %v889, 1
        %v907 = vsel %vm442, %v905, %v906
        %v908 = vrot.slane %v866, 1
        %v909 = vrot.slane %v890, 1
        %v910 = vsel %vm442, %v908, %v909
        %v911 = vrot.slane %v867, 1
        %v912 = vrot.slane %v891, 1
        %v913 = vsel %vm442, %v911, %v912
        %v914 = vrot.slane %v868, 1
        %v915 = vrot.slane %v892, 1
        %v916 = vsel %vm442, %v914, %v915
        %917 = vrot.lane.b32.xlu0 %v895, 8
        %v918 = vpop.permute.xlu0 %917
        %919 = vrot.lane.b32.xlu0 %v898, 8
        %v920 = vpop.permute.xlu0 %919
        %921 = vrot.lane.b32.xlu0 %v901, 8
        %v922 = vpop.permute.xlu0 %921
        %923 = vrot.lane.b32.xlu0 %v904, 8
        %v924 = vpop.permute.xlu0 %923
        %925 = vrot.lane.b32.xlu0 %v907, 8
        %v926 = vpop.permute.xlu0 %925
        %927 = vrot.lane.b32.xlu0 %v910, 8
        %v928 = vpop.permute.xlu0 %927
        %929 = vrot.lane.b32.xlu0 %v913, 8
        %v930 = vpop.permute.xlu0 %929
        %931 = vrot.lane.b32.xlu0 %v916, 8
        %v932 = vpop.permute.xlu0 %931
        %v933 = vrot.slane %v861, 2
        %v934 = vrot.slane %v885, 2
        %v935 = vsel %vm483, %v933, %v934
        %v936 = vrot.slane %v862, 2
        %v937 = vrot.slane %v886, 2
        %v938 = vsel %vm483, %v936, %v937
        %v939 = vrot.slane %v863, 2
        %v940 = vrot.slane %v887, 2
        %v941 = vsel %vm483, %v939, %v940
        %v942 = vrot.slane %v864, 2
        %v943 = vrot.slane %v888, 2
        %v944 = vsel %vm483, %v942, %v943
        %v945 = vrot.slane %v865, 2
        %v946 = vrot.slane %v889, 2
        %v947 = vsel %vm483, %v945, %v946
        %v948 = vrot.slane %v866, 2
        %v949 = vrot.slane %v890, 2
        %v950 = vsel %vm483, %v948, %v949
        %v951 = vrot.slane %v867, 2
        %v952 = vrot.slane %v891, 2
        %v953 = vsel %vm483, %v951, %v952
        %v954 = vrot.slane %v868, 2
        %v955 = vrot.slane %v892, 2
        %v956 = vsel %vm483, %v954, %v955
        %957 = vrot.lane.b32.xlu0 %v935, 16
        %v958 = vpop.permute.xlu0 %957
        %959 = vrot.lane.b32.xlu0 %v938, 16
        %v960 = vpop.permute.xlu0 %959
        %961 = vrot.lane.b32.xlu0 %v941, 16
        %v962 = vpop.permute.xlu0 %961
        %963 = vrot.lane.b32.xlu0 %v944, 16
        %v964 = vpop.permute.xlu0 %963
        %965 = vrot.lane.b32.xlu0 %v947, 16
        %v966 = vpop.permute.xlu0 %965
        %967 = vrot.lane.b32.xlu0 %v950, 16
        %v968 = vpop.permute.xlu0 %967
        %969 = vrot.lane.b32.xlu0 %v953, 16
        %v970 = vpop.permute.xlu0 %969
        %971 = vrot.lane.b32.xlu0 %v956, 16
        %v972 = vpop.permute.xlu0 %971
        %v977 = vunpack.c.l.b16 %v366
        %v978 = vunpack.c.l.b16 %v367
        %v979 = vunpack.c.l.b16 %v369
        %v980 = vunpack.c.l.b16 %v370
        %v981 = vpack.c.b16 %v978, %v977
        %v982 = vpack.c.b16 %v980, %v979
        %983 = vrot.lane.b32.xlu0 %v863, 24
        %v984 = vpop.permute.xlu0 %983
        %985 = vrot.lane.b32.xlu0 %v864, 24
        %v986 = vpop.permute.xlu0 %985
        %987 = vrot.lane.b32.xlu0 %v865, 24
        %v988 = vpop.permute.xlu0 %987
        %989 = vrot.lane.b32.xlu0 %v866, 24
        %v990 = vpop.permute.xlu0 %989
        %991 = vrot.lane.b32.xlu0 %v867, 24
        %v992 = vpop.permute.xlu0 %991
        %993 = vrot.lane.b32.xlu0 %v868, 24
        %v994 = vpop.permute.xlu0 %993
        %995 = vrot.lane.b32.xlu0 %v981, 24
        %v996 = vpop.permute.xlu0 %995
        %997 = vrot.lane.b32.xlu0 %v982, 24
        %v998 = vpop.permute.xlu0 %997
        %v1001 = vunpack.c.l.b16 %v368
        %v1002 = vunpack.c.l.b16 %v371
        %v1003 = vpack.c.b16 %v1001, %v1001
        %v1004 = vpack.c.b16 %v1002, %v1002
        %v1005 = vrot.slane %v981, 1
        %v1006 = vrot.slane %v1003, 1
        %v1007 = vsel %vm442, %v1005, %v1006
        %v1008 = vrot.slane %v982, 1
        %v1009 = vrot.slane %v1004, 1
        %v1010 = vsel %vm442, %v1008, %v1009
        %1011 = vrot.lane.b32.xlu0 %v901, 32
        %v1012 = vpop.permute.xlu0 %1011
        %1013 = vrot.lane.b32.xlu0 %v904, 32
        %v1014 = vpop.permute.xlu0 %1013
        %1015 = vrot.lane.b32.xlu0 %v907, 32
        %v1016 = vpop.permute.xlu0 %1015
        %1017 = vrot.lane.b32.xlu0 %v910, 32
        %v1018 = vpop.permute.xlu0 %1017
        %1019 = vrot.lane.b32.xlu0 %v913, 32
        %v1020 = vpop.permute.xlu0 %1019
        %1021 = vrot.lane.b32.xlu0 %v916, 32
        %v1022 = vpop.permute.xlu0 %1021
        %1023 = vrot.lane.b32.xlu0 %v1007, 32
        %v1024 = vpop.permute.xlu0 %1023
        %1025 = vrot.lane.b32.xlu0 %v1010, 32
        %v1026 = vpop.permute.xlu0 %1025
        %v1027 = vrot.slane %v981, 2
        %v1028 = vrot.slane %v1003, 2
        %v1029 = vsel %vm483, %v1027, %v1028
        %v1030 = vrot.slane %v982, 2
        %v1031 = vrot.slane %v1004, 2
        %v1032 = vsel %vm483, %v1030, %v1031
        %1033 = vrot.lane.b32.xlu0 %v941, 40
        %v1034 = vpop.permute.xlu0 %1033
        %1035 = vrot.lane.b32.xlu0 %v944, 40
        %v1036 = vpop.permute.xlu0 %1035
        %1037 = vrot.lane.b32.xlu0 %v947, 40
        %v1038 = vpop.permute.xlu0 %1037
        %1039 = vrot.lane.b32.xlu0 %v950, 40
        %v1040 = vpop.permute.xlu0 %1039
        %1041 = vrot.lane.b32.xlu0 %v953, 40
        %v1042 = vpop.permute.xlu0 %1041
        %1043 = vrot.lane.b32.xlu0 %v956, 40
        %v1044 = vpop.permute.xlu0 %1043
        %1045 = vrot.lane.b32.xlu0 %v1029, 40
        %v1046 = vpop.permute.xlu0 %1045
        %1047 = vrot.lane.b32.xlu0 %v1032, 40
        %v1048 = vpop.permute.xlu0 %1047
        %v1053 = vunpack.c.l.b16 %v372
        %v1054 = vunpack.c.l.b16 %v373
        %v1055 = vunpack.c.l.b16 %v375
        %v1056 = vunpack.c.l.b16 %v376
        %v1057 = vpack.c.b16 %v1054, %v1053
        %v1058 = vpack.c.b16 %v1056, %v1055
        %1059 = vrot.lane.b32.xlu0 %v865, 48
        %v1060 = vpop.permute.xlu0 %1059
        %1061 = vrot.lane.b32.xlu0 %v866, 48
        %v1062 = vpop.permute.xlu0 %1061
        %1063 = vrot.lane.b32.xlu0 %v867, 48
        %v1064 = vpop.permute.xlu0 %1063
        %1065 = vrot.lane.b32.xlu0 %v868, 48
        %v1066 = vpop.permute.xlu0 %1065
        %1067 = vrot.lane.b32.xlu0 %v981, 48
        %v1068 = vpop.permute.xlu0 %1067
        %1069 = vrot.lane.b32.xlu0 %v982, 48
        %v1070 = vpop.permute.xlu0 %1069
        %1071 = vrot.lane.b32.xlu0 %v1057, 48
        %v1072 = vpop.permute.xlu0 %1071
        %1073 = vrot.lane.b32.xlu0 %v1058, 48
        %v1074 = vpop.permute.xlu0 %1073
        %v1077 = vunpack.c.l.b16 %v374
        %v1078 = vunpack.c.l.b16 %v377
        %v1079 = vpack.c.b16 %v1077, %v1077
        %v1080 = vpack.c.b16 %v1078, %v1078
        %v1081 = vrot.slane %v1057, 1
        %v1082 = vrot.slane %v1079, 1
        %v1083 = vsel %vm442, %v1081, %v1082
        %v1084 = vrot.slane %v1058, 1
        %v1085 = vrot.slane %v1080, 1
        %v1086 = vsel %vm442, %v1084, %v1085
        %1087 = vrot.lane.b32.xlu0 %v907, 56
        %v1088 = vpop.permute.xlu0 %1087
        %1089 = vrot.lane.b32.xlu0 %v910, 56
        %v1090 = vpop.permute.xlu0 %1089
        %1091 = vrot.lane.b32.xlu0 %v913, 56
        %v1092 = vpop.permute.xlu0 %1091
        %1093 = vrot.lane.b32.xlu0 %v916, 56
        %v1094 = vpop.permute.xlu0 %1093
        %1095 = vrot.lane.b32.xlu0 %v1007, 56
        %v1096 = vpop.permute.xlu0 %1095
        %1097 = vrot.lane.b32.xlu0 %v1010, 56
        %v1098 = vpop.permute.xlu0 %1097
        %1099 = vrot.lane.b32.xlu0 %v1083, 56
        %v1100 = vpop.permute.xlu0 %1099
        %1101 = vrot.lane.b32.xlu0 %v1086, 56
        %v1102 = vpop.permute.xlu0 %1101
        %v1103 = vrot.slane %v1057, 2
        %v1104 = vrot.slane %v1079, 2
        %v1105 = vsel %vm483, %v1103, %v1104
        %v1106 = vrot.slane %v1058, 2
        %v1107 = vrot.slane %v1080, 2
        %v1108 = vsel %vm483, %v1106, %v1107
        %1109 = vrot.lane.b32.xlu0 %v947, 64
        %v1110 = vpop.permute.xlu0 %1109
        %1111 = vrot.lane.b32.xlu0 %v950, 64
        %v1112 = vpop.permute.xlu0 %1111
        %1113 = vrot.lane.b32.xlu0 %v953, 64
        %v1114 = vpop.permute.xlu0 %1113
        %1115 = vrot.lane.b32.xlu0 %v956, 64
        %v1116 = vpop.permute.xlu0 %1115
        %1117 = vrot.lane.b32.xlu0 %v1029, 64
        %v1118 = vpop.permute.xlu0 %1117
        %1119 = vrot.lane.b32.xlu0 %v1032, 64
        %v1120 = vpop.permute.xlu0 %1119
        %1121 = vrot.lane.b32.xlu0 %v1105, 64
        %v1122 = vpop.permute.xlu0 %1121
        %1123 = vrot.lane.b32.xlu0 %v1108, 64
        %v1124 = vpop.permute.xlu0 %1123
        %v1127 = vsel %vm676, %v861, %v918
        %v1130 = vsel %vm676, %v862, %v920
        %v1133 = vsel %vm676, %v863, %v922
        %v1136 = vsel %vm676, %v864, %v924
        %v1139 = vsel %vm676, %v865, %v926
        %v1142 = vsel %vm676, %v866, %v928
        %v1145 = vsel %vm676, %v867, %v930
        %v1148 = vsel %vm676, %v868, %v932
        %v1150 = vsel %vm701, %v1127, %v958
        %v1152 = vsel %vm701, %v1130, %v960
        %v1154 = vsel %vm701, %v1133, %v962
        %v1156 = vsel %vm701, %v1136, %v964
        %v1158 = vsel %vm701, %v1139, %v966
        %v1160 = vsel %vm701, %v1142, %v968
        %v1162 = vsel %vm701, %v1145, %v970
        %v1164 = vsel %vm701, %v1148, %v972
        %v1166 = vsel %vm718, %v1150, %v984
        %v1168 = vsel %vm718, %v1152, %v986
        %v1170 = vsel %vm718, %v1154, %v988
        %v1172 = vsel %vm718, %v1156, %v990
        %v1174 = vsel %vm718, %v1158, %v992
        %v1176 = vsel %vm718, %v1160, %v994
        %v1178 = vsel %vm718, %v1162, %v996
        %v1180 = vsel %vm718, %v1164, %v998
        %v1182 = vsel %vm735, %v1166, %v1012
        %v1184 = vsel %vm735, %v1168, %v1014
        %v1186 = vsel %vm735, %v1170, %v1016
        %v1188 = vsel %vm735, %v1172, %v1018
        %v1190 = vsel %vm735, %v1174, %v1020
        %v1192 = vsel %vm735, %v1176, %v1022
        %v1194 = vsel %vm735, %v1178, %v1024
        %v1196 = vsel %vm735, %v1180, %v1026
        %v1198 = vsel %vm752, %v1182, %v1034
        %v1200 = vsel %vm752, %v1184, %v1036
        %v1202 = vsel %vm752, %v1186, %v1038
        %v1204 = vsel %vm752, %v1188, %v1040
        %v1206 = vsel %vm752, %v1190, %v1042
        %v1208 = vsel %vm752, %v1192, %v1044
        %v1210 = vsel %vm752, %v1194, %v1046
        %v1212 = vsel %vm752, %v1196, %v1048
        %v1214 = vsel %vm769, %v1198, %v1060
        %v1216 = vsel %vm769, %v1200, %v1062
        %v1218 = vsel %vm769, %v1202, %v1064
        %v1220 = vsel %vm769, %v1204, %v1066
        %v1222 = vsel %vm769, %v1206, %v1068
        %v1224 = vsel %vm769, %v1208, %v1070
        %v1226 = vsel %vm769, %v1210, %v1072
        %v1228 = vsel %vm769, %v1212, %v1074
        %v1230 = vsel %vm786, %v1214, %v1088
        %v1232 = vsel %vm786, %v1216, %v1090
        %v1234 = vsel %vm786, %v1218, %v1092
        %v1236 = vsel %vm786, %v1220, %v1094
        %v1238 = vsel %vm786, %v1222, %v1096
        %v1240 = vsel %vm786, %v1224, %v1098
        %v1242 = vsel %vm786, %v1226, %v1100
        %v1244 = vsel %vm786, %v1228, %v1102
        %v1246 = vsel %vm803, %v1230, %v1110
        %v1248 = vsel %vm803, %v1232, %v1112
        %v1250 = vsel %vm803, %v1234, %v1114
        %v1252 = vsel %vm803, %v1236, %v1116
        %v1254 = vsel %vm803, %v1238, %v1118
        %v1256 = vsel %vm803, %v1240, %v1120
        %v1258 = vsel %vm803, %v1242, %v1122
        %v1260 = vsel %vm803, %v1244, %v1124
        %v1261 = vld [vmem:[%s301] sm:$0xf]
        %v1262 = vld [vmem:[%s301 + $0x4] sm:$0xf]
        %v1263 = vld [vmem:[%s301 + $0x8] sm:$0xf]
        %v1264 = vld [vmem:[%s301 + $0xc] sm:$0xf]
        %v1265 = vld [vmem:[%s301 + $0x10] sm:$0xf]
        %v1266 = vld [vmem:[%s301 + $0x14] sm:$0xf]
        %v1267 = vld [vmem:[%s301 + $0x18] sm:$0xf]
        %v1268 = vld [vmem:[%s301 + $0x1c] sm:$0xf]
        %v1269 = vld [vmem:[%s301 + $0x20] sm:$0xf]
        %v1279 = vunpack.c.l.b16 %v1261
        %v1280 = vunpack.c.l.b16 %v1262
        %v1281 = vunpack.c.l.b16 %v1263
        %v1282 = vunpack.c.l.b16 %v1264
        %v1283 = vunpack.c.l.b16 %v1265
        %v1284 = vunpack.c.l.b16 %v1266
        %v1285 = vunpack.c.l.b16 %v1267
        %v1286 = vunpack.c.l.b16 %v1268
        %v1287 = vunpack.c.l.b16 %v1269
        %v1288 = vpack.c.b16 %v1280, %v1279
        %v1289 = vpack.c.b16 %v1282, %v1281
        %v1290 = vpack.c.b16 %v1284, %v1283
        %v1291 = vpack.c.b16 %v1286, %v1285
        %v1292 = vpack.c.b16 %v1287, %v1287
        %vm1297 = vcmask 588800
        %v1298 = vsel %vm1297, %v1246, 0
        %v1300 = vsel %vm1297, %v1248, 0
        %v1302 = vsel %vm1297, %v1250, 0
        %v1304 = vsel %vm1297, %v1252, 0
        %v1306 = vsel %vm1297, %v1254, 0
        %v1308 = vsel %vm1297, %v1256, 0
        %v1310 = vsel %vm1297, %v1258, 0
        %v1312 = vsel %vm1297, %v1260, 0
        %vm1314 = vcmask 1043456
        %v1316 = vsel %vm1314, %v1292, 0
        %1318 = vmatpush.bf16.msra.mxu0 0
        %1319 = vmatpush.bf16.msra.mxu0 0
        %1320 = vmatpush.bf16.msra.mxu0 0
        %1321 = vmatpush.bf16.msra.mxu0 %v1316
        %1322 = vmatpush.bf16.msra.mxu0 %v1291
        %1323 = vmatpush.bf16.msra.mxu0 %v1290
        %1324 = vmatpush.bf16.msra.mxu0 %v1289
        %1325 = vmatpush.bf16.msra.mxu0 %v1288
        %1326 = vmatmul.bf16.gmra.mxu0 %v1298
        %v1327 = vpop.f32.mrf.mxu0
        %v1328 = vadd.f32 0.0, %v1327
        %v1329 = vpop.f32.mrf.mxu0
        %v1330 = vadd.f32 0.0, %v1329
        %1331 = vmatmul.bf16.gmra.mxu0 %v1300
        %v1332 = vpop.f32.mrf.mxu0
        %v1333 = vadd.f32 0.0, %v1332
        %v1334 = vpop.f32.mrf.mxu0
        %v1335 = vadd.f32 0.0, %v1334
        %1336 = vmatmul.bf16.gmra.mxu0 %v1302
        %v1337 = vpop.f32.mrf.mxu0
        %v1338 = vadd.f32 0.0, %v1337
        %v1339 = vpop.f32.mrf.mxu0
        %v1340 = vadd.f32 0.0, %v1339
        %1341 = vmatmul.bf16.gmra.mxu0 %v1304
        %v1342 = vpop.f32.mrf.mxu0
        %v1343 = vadd.f32 0.0, %v1342
        %v1344 = vpop.f32.mrf.mxu0
        %v1345 = vadd.f32 0.0, %v1344
        %1346 = vmatmul.bf16.gmra.mxu0 %v1306
        %v1347 = vpop.f32.mrf.mxu0
        %v1348 = vadd.f32 0.0, %v1347
        %v1349 = vpop.f32.mrf.mxu0
        %v1350 = vadd.f32 0.0, %v1349
        %1351 = vmatmul.bf16.gmra.mxu0 %v1308
        %v1352 = vpop.f32.mrf.mxu0
        %v1353 = vadd.f32 0.0, %v1352
        %v1354 = vpop.f32.mrf.mxu0
        %v1355 = vadd.f32 0.0, %v1354
        %1356 = vmatmul.bf16.gmra.mxu0 %v1310
        %v1357 = vpop.f32.mrf.mxu0
        %v1358 = vadd.f32 0.0, %v1357
        %v1359 = vpop.f32.mrf.mxu0
        %v1360 = vadd.f32 0.0, %v1359
        %1361 = vmatmul.bf16.gmra.mxu0 %v1312
        %v1362 = vpop.f32.mrf.mxu0
        %v1363 = vadd.f32 0.0, %v1362
        %v1364 = vpop.f32.mrf.mxu0
        %v1365 = vadd.f32 0.0, %v1364
        %1366 = vdwg.mxu0
        %v1376 = vunpack.c.l.b16 %v820
        %v1377 = vunpack.c.l.b16 %v821
        %v1378 = vunpack.c.l.b16 %v822
        %v1379 = vunpack.c.l.b16 %v823
        %v1380 = vunpack.c.l.b16 %v824
        %v1381 = vunpack.c.l.b16 %v825
        %v1382 = vunpack.c.l.b16 %v826
        %v1383 = vunpack.c.l.b16 %v827
        %v1384 = vunpack.c.l.b16 %v828
        %v1385 = vpack.c.b16 %v1377, %v1376
        %v1386 = vpack.c.b16 %v1379, %v1378
        %v1387 = vpack.c.b16 %v1381, %v1380
        %v1388 = vpack.c.b16 %v1383, %v1382
        %v1389 = vpack.c.b16 %v1384, %v1384
        %v1394 = vsel %vm1297, %v805, 0
        %v1396 = vsel %vm1297, %v807, 0
        %v1398 = vsel %vm1297, %v809, 0
        %v1400 = vsel %vm1297, %v811, 0
        %v1402 = vsel %vm1297, %v813, 0
        %v1404 = vsel %vm1297, %v815, 0
        %v1406 = vsel %vm1297, %v817, 0
        %v1408 = vsel %vm1297, %v819, 0
        %v1411 = vsel %vm1314, %v1389, 0
        %1413 = vmatpush.bf16.msra.mxu0 0
        %1414 = vmatpush.bf16.msra.mxu0 0
        %1415 = vmatpush.bf16.msra.mxu0 0
        %1416 = vmatpush.bf16.msra.mxu0 %v1411
        %1417 = vmatpush.bf16.msra.mxu0 %v1388
        %1418 = vmatpush.bf16.msra.mxu0 %v1387
        %1419 = vmatpush.bf16.msra.mxu0 %v1386
        %1420 = vmatpush.bf16.msra.mxu0 %v1385
        %1421 = vmatmul.bf16.gmra.mxu0 %v1394
        %v1422 = vpop.f32.mrf.mxu0
        %v1423 = vadd.f32 %v1328, %v1422
        %v1424 = vpop.f32.mrf.mxu0
        %v1425 = vadd.f32 %v1330, %v1424
        %1426 = vmatmul.bf16.gmra.mxu0 %v1396
        %v1427 = vpop.f32.mrf.mxu0
        %v1428 = vadd.f32 %v1333, %v1427
        %v1429 = vpop.f32.mrf.mxu0
        %v1430 = vadd.f32 %v1335, %v1429
        %1431 = vmatmul.bf16.gmra.mxu0 %v1398
        %v1432 = vpop.f32.mrf.mxu0
        %v1433 = vadd.f32 %v1338, %v1432
        %v1434 = vpop.f32.mrf.mxu0
        %v1435 = vadd.f32 %v1340, %v1434
        %1436 = vmatmul.bf16.gmra.mxu0 %v1400
        %v1437 = vpop.f32.mrf.mxu0
        %v1438 = vadd.f32 %v1343, %v1437
        %v1439 = vpop.f32.mrf.mxu0
        %v1440 = vadd.f32 %v1345, %v1439
        %1441 = vmatmul.bf16.gmra.mxu0 %v1402
        %v1442 = vpop.f32.mrf.mxu0
        %v1443 = vadd.f32 %v1348, %v1442
        %v1444 = vpop.f32.mrf.mxu0
        %v1445 = vadd.f32 %v1350, %v1444
        %1446 = vmatmul.bf16.gmra.mxu0 %v1404
        %v1447 = vpop.f32.mrf.mxu0
        %v1448 = vadd.f32 %v1353, %v1447
        %v1449 = vpop.f32.mrf.mxu0
        %v1450 = vadd.f32 %v1355, %v1449
        %1451 = vmatmul.bf16.gmra.mxu0 %v1406
        %v1452 = vpop.f32.mrf.mxu0
        %v1453 = vadd.f32 %v1358, %v1452
        %v1454 = vpop.f32.mrf.mxu0
        %v1455 = vadd.f32 %v1360, %v1454
        %1456 = vmatmul.bf16.gmra.mxu0 %v1408
        %v1457 = vpop.f32.mrf.mxu0
        %v1458 = vadd.f32 %v1363, %v1457
        %v1459 = vpop.f32.mrf.mxu0
        %v1460 = vadd.f32 %v1365, %v1459
        %1461 = vdwg.mxu0
        %v1462 = vld [vmem:[%s304] sm:$0x1]
        %v1464 = vperm.slane %v1462, 0
        %v1466 = vadd.f32 %v1423, %v1464
        %v1467 = vadd.f32 %v1425, %v1464
        %v1468 = vadd.f32 %v1428, %v1464
        %v1469 = vadd.f32 %v1430, %v1464
        %v1470 = vadd.f32 %v1433, %v1464
        %v1471 = vadd.f32 %v1435, %v1464
        %v1472 = vadd.f32 %v1438, %v1464
        %v1473 = vadd.f32 %v1440, %v1464
        %v1474 = vadd.f32 %v1443, %v1464
        %v1475 = vadd.f32 %v1445, %v1464
        %v1476 = vadd.f32 %v1448, %v1464
        %v1477 = vadd.f32 %v1450, %v1464
        %v1478 = vadd.f32 %v1453, %v1464
        %v1479 = vadd.f32 %v1455, %v1464
        %v1480 = vadd.f32 %v1458, %v1464
        %v1481 = vadd.f32 %v1460, %v1464
        %v1482 = vmax.f32 %v1466, 0.0
        %v1483 = vmax.f32 %v1467, 0.0
        %v1484 = vmax.f32 %v1468, 0.0
        %v1485 = vmax.f32 %v1469, 0.0
        %v1486 = vmax.f32 %v1470, 0.0
        %v1487 = vmax.f32 %v1471, 0.0
        %v1488 = vmax.f32 %v1472, 0.0
        %v1489 = vmax.f32 %v1473, 0.0
        %v1490 = vmax.f32 %v1474, 0.0
        %v1491 = vmax.f32 %v1475, 0.0
        %v1492 = vmax.f32 %v1476, 0.0
        %v1493 = vmax.f32 %v1477, 0.0
        %v1494 = vmax.f32 %v1478, 0.0
        %v1495 = vmax.f32 %v1479, 0.0
        %v1496 = vmax.f32 %v1480, 0.0
        %v1497 = vmax.f32 %v1481, 0.0
        %v1498 = vpack.c.bf16 %v1482, %v1482
        %v1499 = vpack.c.bf16 %v1483, %v1483
        %v1500 = vpack.c.bf16 %v1484, %v1484
        %v1501 = vpack.c.bf16 %v1485, %v1485
        %v1502 = vpack.c.bf16 %v1486, %v1486
        %v1503 = vpack.c.bf16 %v1487, %v1487
        %v1504 = vpack.c.bf16 %v1488, %v1488
        %v1505 = vpack.c.bf16 %v1489, %v1489
        %v1506 = vpack.c.bf16 %v1490, %v1490
        %v1507 = vpack.c.bf16 %v1491, %v1491
        %v1508 = vpack.c.bf16 %v1492, %v1492
        %v1509 = vpack.c.bf16 %v1493, %v1493
        %v1510 = vpack.c.bf16 %v1494, %v1494
        %v1511 = vpack.c.bf16 %v1495, %v1495
        %v1512 = vpack.c.bf16 %v1496, %v1496
        %v1513 = vpack.c.bf16 %v1497, %v1497
        %vm1514 = vcmask 191488
        %1515 = vst.msk [vmem:[%s283] sm:$0xf] %vm1514, %v1498
        %1516 = vst.msk [vmem:[%s283 + $0x4] sm:$0xf] %vm1514, %v1499
        %1517 = vst.msk [vmem:[%s283 + $0x8] sm:$0xf] %vm1514, %v1500
        %1518 = vst.msk [vmem:[%s283 + $0xc] sm:$0xf] %vm1514, %v1501
        %1519 = vst.msk [vmem:[%s283 + $0x10] sm:$0xf] %vm1514, %v1502
        %1520 = vst.msk [vmem:[%s283 + $0x14] sm:$0xf] %vm1514, %v1503
        %1521 = vst.msk [vmem:[%s283 + $0x18] sm:$0xf] %vm1514, %v1504
        %1522 = vst.msk [vmem:[%s283 + $0x1c] sm:$0xf] %vm1514, %v1505
        %1523 = vst.msk [vmem:[%s283 + $0x20] sm:$0xf] %vm1514, %v1506
        %1524 = vst.msk [vmem:[%s283 + $0x24] sm:$0xf] %vm1514, %v1507
        %1525 = vst.msk [vmem:[%s283 + $0x28] sm:$0xf] %vm1514, %v1508
        %1526 = vst.msk [vmem:[%s283 + $0x2c] sm:$0xf] %vm1514, %v1509
        %1527 = vst.msk [vmem:[%s283 + $0x30] sm:$0xf] %vm1514, %v1510
        %1528 = vst.msk [vmem:[%s283 + $0x34] sm:$0xf] %vm1514, %v1511
        %1529 = vst.msk [vmem:[%s283 + $0x38] sm:$0xf] %vm1514, %v1512
        %1530 = vst.msk [vmem:[%s283 + $0x3c] sm:$0xf] %vm1514, %v1513
        %s1531 = sand.u32 %s171, 1
        %s1532 = scalar_lea.sflag [#allocation3], %s1531
        %s1533 = sand.u32 %s171, 1
        %s1534 = smul.addr %s1533, 64
        %s1535 = scalar_lea.vmem [#allocation2], %s1534
        // Predicated region
        $region41: #{tpu_custom_call.1} parent=39 // pred_check
          %p1536 = pneg %p181
        $region42: #{tpu_custom_call.1} parent=39 // pred_check_branch
          %1538 = sbr.rel (%p1536) target = $region44
        $region43: #{tpu_custom_call.1} parent=39 // pred_region
          %1540 = vsyncadd %s1532, 0
          %s1541 = smul.addr %s23, 16
          %s1542 = sadd.s32 %s24, %s1541
          %s1543 = smul.addr %s1542, 4
          %s1544 = scalar_lea.hbm %s5, %s1543
          %s1545 = sshll.u32 %s1535, 4
          %s1546 = int_to_ptr.vmem [resolvable:$true] %s1545
          %s1547 = sshll.u32 %s1544, 4
          %s1548 = int_to_ptr.hbm [resolvable:$true] %s1547
          %1553 = dma.vmem_to_hbm [thread:$0]  %s1546, 1024, %s1548, %s1532, 64, 64, 4
        $region44: #{tpu_custom_call.1} parent=39 // pred_fallthru
          _
      $region40: #{tpu_custom_call.1} parent=5 // pred_fallthru
        _
      %p1554 = scmp.le.s32.totalorder 2, %s14
      // Predicated region
      $region45: #{tpu_custom_call.1} parent=5 // pred_check
        %p1555 = pneg %p1554
      $region46: #{tpu_custom_call.1} parent=5 // pred_check_branch
        %1557 = sbr.rel (%p1555) target = $region48
      $region47: #{tpu_custom_call.1} parent=5 // pred_region
        %s1558 = ssub.s32 %s14, 2
        // Predicated region
        $region49: #{tpu_custom_call.1} parent=47 // pred_check
          %p1559 = pneg %p187
        $region50: #{tpu_custom_call.1} parent=47 // pred_check_branch
          %1561 = sbr.rel (%p1559) target = $region52
        $region51: #{tpu_custom_call.1} parent=47 // pred_region
          %s1562 = sand.u32 %s172, 1
          %s1563 = scalar_lea.sflag [#allocation3], %s1562
          %s1564 = sand.u32 %s172, 1
          %s1565 = smul.addr %s1564, 64
          %s1566 = scalar_lea.vmem [#allocation2], %s1565
          %1568 = dma.done %s1563, 1024
        $region52: #{tpu_custom_call.1} parent=47 // pred_fallthru
          _
      $region48: #{tpu_custom_call.1} parent=5 // pred_fallthru
        _
    $region6: #{tpu_custom_call.1} parent=1 // loop_footer
      %s18 = sadd.s32 1, %s14
    $region7: #{tpu_custom_call.1} parent=1 // loop_footer_branch
      %13 = sbr.rel target = $region3
    $region8: #{tpu_custom_call.1} parent=1 // loop_exit
      _
    %1569 = vsyncpa [#allocation3], 1
    %s1570 = scalar_lea.sflag [#allocation3], 1
    %1571 = vsyncpa %s1570, 1

</llo_original>
